<compile_context>
chip_gen: v7x
topology: tpu7x:2x2x1
jax: 0.10.0
libtpu: 0.0.40
codegen_flags: <defaults>
</compile_context>

<pallas_src>
import functools

import numpy as np
import jax
import jax.numpy as jnp
from jax.experimental import pallas as pl
from jax.experimental.pallas import tpu as pltpu

DIM = 32
HEADS = 8
DIM_HEAD = 16
INNER = HEADS * DIM_HEAD          # 128
SCALE = DIM_HEAD ** (-0.5)        # 0.25

# Specialised to the SAINT defaults with sequence length N == HEADS (asserted
# in attention_forward); this is what makes the module's permute/reshape and
# final out.view(B, N, -1) fold cleanly into weight permutations.
SEQ = 8
JJ = DIM_HEAD // SEQ              # 2 column groups per head-dim
NH = SEQ * HEADS                  # 64 flattened (query-pos, head) pairs


# ----------------------------- fused Pallas kernel ------------------------- #

def _fused_attention_kernel(x_ref, wq_ref, wkv_ref, wout_ref, bout_ref, o_ref,
                            *, scale):
    f32 = jnp.float32
    x = x_ref[0]                                              # (SEQ, DIM) = (8, 32)

    # --- projections (restructured weights, see _restructure_params) -------
    # qq[j*NH + i*HEADS + h, n] = q_heads[h, i, j*SEQ + n]
    qq = jax.lax.dot_general(wq_ref[...], x, (((1,), (1,)), ((), ())),
                             preferred_element_type=f32)      # (128, 8)
    # kv[n,        j*NH + jk*HEADS + h] = k_heads[h, jk, j*SEQ + n]   cols [0,128)
    # kv[n, 2*NH + j*NH + jv*HEADS + h] = v_heads[h, jv, j*SEQ + n]   cols [128,256)
    kv = jnp.dot(x, wkv_ref[...], preferred_element_type=f32)  # (8, 256) lane-dense

    # --- scores over flattened (pos, head) pairs ----------------------------
    # s[p, q] = <q_heads[head(p), pos(p)], k_heads[head(q), pos(q)]> * scale
    s = (jnp.dot(qq[:NH, :], kv[:, :NH], preferred_element_type=f32)
         + jnp.dot(qq[NH:2 * NH, :], kv[:, NH:2 * NH],
                   preferred_element_type=f32)) * scale       # (64, 64)

    # mask cross-head pairs: head index == pair index mod HEADS (power of 2)
    rows = jax.lax.broadcasted_iota(jnp.int32, (NH, NH), 0)
    cols = jax.lax.broadcasted_iota(jnp.int32, (NH, NH), 1)
    same_head = (jnp.bitwise_and(rows, HEADS - 1)
                 == jnp.bitwise_and(cols, HEADS - 1))
    s = jnp.where(same_head, s, -1e30)

    # numerically-stable softmax over the key axis (masked entries -> 0)
    s = s - jnp.max(s, axis=-1, keepdims=True)
    prob = jnp.exp(s)
    prob = prob * pl.reciprocal(jnp.sum(prob, axis=-1, keepdims=True),
                                approx=True)

    # --- attention output pairs ---------------------------------------------
    # oo[j][i*HEADS + h, m] = out_heads[h, i, j*SEQ + m]
    oo = tuple(
        jax.lax.dot_general(prob, kv[:, 2 * NH + j * NH: 2 * NH + (j + 1) * NH],
                            (((1,), (1,)), ((), ())),
                            preferred_element_type=f32)        # (64, 8)
        for j in range(JJ))

    # --- out.view(B, N, -1) + to_out, folded into contiguous block matmuls --
    # out[n, e] = b[e] + sum_{i,j,m} oo[j][i*HEADS + n, m] * W_out[e, (i*JJ+j)*SEQ + m]
    acc = jnp.zeros((SEQ, DIM), f32)
    for k in range(INNER // SEQ):                             # 16 (8,8)@(8,32) blocks
        i, j = k // JJ, k % JJ
        acc = acc + jnp.dot(oo[j][i * HEADS:(i + 1) * HEADS, :], wout_ref[k],
                            preferred_element_type=f32)
    acc = acc + bout_ref[...]                                 # (1, DIM) broadcast
    o_ref[0] = acc.astype(o_ref.dtype)


# ------------------------- weight restructuring (host) --------------------- #

def _restructure_params(w_qkv, w_out, b_out):
    """Fold the module's permute(0,2,1).reshape head split and the final
    out.view() into reorderings of the tiny weight tensors (layout-only,
    done once outside the kernel; no activation data moves)."""
    # q_heads[h, i, d] = x[d%SEQ, :] . Wq[h*DIM_HEAD + i*JJ + d//SEQ, :]
    # restructured row r = j*SEQ*HEADS + i*HEADS + h  ->  source row below
    r = np.arange(INNER)
    j = r // (SEQ * HEADS)
    p = r % (SEQ * HEADS)
    i = p // HEADS
    h = p % HEADS
    perm = h * DIM_HEAD + i * JJ + j                       # permutation of 0..127

    wq_r = w_qkv[0 * INNER:1 * INNER][perm]                # (128, 32)
    wk_r = w_qkv[1 * INNER:2 * INNER][perm]                # (128, 32)
    wv_r = w_qkv[2 * INNER:3 * INNER][perm]                # (128, 32)
    wkv_r_t = jnp.concatenate([wk_r, wv_r], axis=0).T      # (32, 256) lane-dense RHS
    w_out_r = w_out.T.reshape(INNER // SEQ, SEQ, DIM)      # (16, 8, 32) column blocks
    return wq_r, wkv_r_t, w_out_r, b_out[None, :]


# ------------------------------ forward pass ------------------------------- #

def attention_forward(x, w_qkv, w_out, b_out):
    """Reproduces Attention.forward from SAINT.py exactly (single fused kernel)."""
    B, n_seq, dim = x.shape
    assert dim == DIM and n_seq == SEQ and SEQ == HEADS and DIM_HEAD % SEQ == 0

    wq_r, wkv_r_t, w_out_r, b_row = _restructure_params(w_qkv, w_out, b_out)
    kernel = functools.partial(_fused_attention_kernel, scale=SCALE)
    return pl.pallas_call(
        kernel,
        grid=(B,),
        in_specs=[
            pl.BlockSpec((1, SEQ, DIM), lambda b: (b, 0, 0)),            # x
            pl.BlockSpec((INNER, DIM), lambda b: (0, 0)),                # Wq (restructured)
            pl.BlockSpec((DIM, 2 * INNER), lambda b: (0, 0)),            # [Wk|Wv]^T (restructured)
            pl.BlockSpec((INNER // SEQ, SEQ, DIM), lambda b: (0, 0, 0)),  # W_out blocks
            pl.BlockSpec((1, DIM), lambda b: (0, 0)),                    # bias row
        ],
        out_specs=pl.BlockSpec((1, SEQ, DIM), lambda b: (b, 0, 0)),
        out_shape=jax.ShapeDtypeStruct((B, SEQ, DIM), x.dtype),
        compiler_params=pltpu.CompilerParams(
            dimension_semantics=("parallel",)),   # batches shard across TCs (v7x)
    )(x, wq_r, wkv_r_t, w_out_r, b_row)


def reference_forward(x, w_qkv, w_out, b_out):
    """Pure-JAX replica of the PyTorch forward, for verification."""
    B, N, _ = x.shape
    qkv = x @ w_qkv.T
    q, k, v = jnp.split(qkv, 3, axis=-1)
    rs = lambda t: jnp.transpose(t, (0, 2, 1)).reshape(B, HEADS, N, DIM_HEAD)
    q, k, v = rs(q), rs(k), rs(v)
    sim = jnp.einsum('bhid,bhjd->bhij', q, k) * SCALE
    attn = jax.nn.softmax(sim, axis=-1)
    out = jnp.einsum('bhij,bhjd->bhid', attn, v)
    out = out.reshape(B, N, INNER)
    return out @ w_out.T + b_out


# ---------------------------------- main ----------------------------------- #

if __name__ == "__main__":
    key = jax.random.PRNGKey(0)
    kx, kqkv, kw, kb = jax.random.split(key, 4)

    B, N = 2, 8
    x = jax.random.normal(kx, (B, N, DIM), jnp.float32)

    # Deterministic synthetic parameters (shapes from __init__):
    #   to_qkv.weight: (inner_dim*3, dim), to_out.weight: (dim, inner_dim),
    #   to_out.bias: (dim,)
    w_qkv = 0.02 * jax.random.normal(kqkv, (3 * INNER, DIM), jnp.float32)
    w_out = 0.02 * jax.random.normal(kw, (DIM, INNER), jnp.float32)
    b_out = 0.02 * jax.random.normal(kb, (DIM,), jnp.float32)

    out = jax.jit(attention_forward)(x, w_qkv, w_out, b_out)
    out = jax.block_until_ready(out)

    ref = reference_forward(x, w_qkv, w_out, b_out)
    assert out.shape == (B, N, DIM), out.shape
    assert jnp.allclose(out, ref, atol=1e-4, rtol=1e-4), \
        float(jnp.max(jnp.abs(out - ref)))

    print("KERNEL_OK")
</pallas_src>

<mosaic_0001>
module attributes {stable_mosaic.version = 11 : i64} {
  func.func @_fused_attention_kernel(%arg0: i32, %arg1: memref<1x8x32xf32, #tpu.memory_space<vmem>>, %arg2: memref<128x32xf32, #tpu.memory_space<vmem>>, %arg3: memref<32x256xf32, #tpu.memory_space<vmem>>, %arg4: memref<16x8x32xf32, #tpu.memory_space<vmem>>, %arg5: memref<1x32xf32, #tpu.memory_space<vmem>>, %arg6: memref<1x8x32xf32, #tpu.memory_space<vmem>>) attributes {dimension_semantics = [#tpu.dimension_semantics<parallel>], iteration_bounds = array<i64: 2>, scalar_prefetch = 0 : i64, scratch_operands = 0 : i64, tpu.core_type = #tpu.core_type<tc>, window_params = [{transform_indices = @transform_0, window_bounds = array<i64: 1, 8, 32>}, {pipeline_mode = #tpu.pipeline_mode<synchronous>, transform_indices = @transform_1, window_bounds = array<i64: 128, 32>}, {pipeline_mode = #tpu.pipeline_mode<synchronous>, transform_indices = @transform_2, window_bounds = array<i64: 32, 256>}, {pipeline_mode = #tpu.pipeline_mode<synchronous>, transform_indices = @transform_3, window_bounds = array<i64: 16, 8, 32>}, {pipeline_mode = #tpu.pipeline_mode<synchronous>, transform_indices = @transform_4, window_bounds = array<i64: 1, 32>}, {transform_indices = @transform_5, window_bounds = array<i64: 1, 8, 32>}]} {
    %c0 = arith.constant 0 : index
    %c0_0 = arith.constant 0 : index
    %c0_1 = arith.constant 0 : index
    %0 = vector.load %arg1[%c0, %c0_0, %c0_1] : memref<1x8x32xf32, #tpu.memory_space<vmem>>, vector<1x8x32xf32>
    %1 = vector.shape_cast %0 : vector<1x8x32xf32> to vector<8x32xf32>
    %c0_2 = arith.constant 0 : index
    %c0_3 = arith.constant 0 : index
    %2 = vector.load %arg2[%c0_2, %c0_3] : memref<128x32xf32, #tpu.memory_space<vmem>>, vector<128x32xf32>
    %cst = arith.constant dense<0.000000e+00> : vector<128x8xf32>
    %3 = tpu.matmul %2, %1, %cst {dimension_numbers = #tpu.dot_dimension_numbers<[1], [1], [0], [0], [0, 0, 1, 0], [], []>} : vector<128x32xf32>, vector<8x32xf32>, vector<128x8xf32> -> vector<128x8xf32>
    %c0_4 = arith.constant 0 : index
    %c0_5 = arith.constant 0 : index
    %4 = vector.load %arg3[%c0_4, %c0_5] : memref<32x256xf32, #tpu.memory_space<vmem>>, vector<32x256xf32>
    %cst_6 = arith.constant dense<0.000000e+00> : vector<8x256xf32>
    %5 = tpu.matmul %1, %4, %cst_6 {dimension_numbers = #tpu.dot_dimension_numbers<[1], [0], [0], [1], [0, 0, 1, 1], [], []>} : vector<8x32xf32>, vector<32x256xf32>, vector<8x256xf32> -> vector<8x256xf32>
    %6 = vector.extract_strided_slice %3 {offsets = [0, 0], sizes = [64, 8], strides = [1, 1]} : vector<128x8xf32> to vector<64x8xf32>
    %7 = vector.extract_strided_slice %5 {offsets = [0, 0], sizes = [8, 64], strides = [1, 1]} : vector<8x256xf32> to vector<8x64xf32>
    %cst_7 = arith.constant dense<0.000000e+00> : vector<64x64xf32>
    %8 = tpu.matmul %6, %7, %cst_7 {dimension_numbers = #tpu.dot_dimension_numbers<[1], [0], [0], [1], [0, 0, 1, 1], [], []>} : vector<64x8xf32>, vector<8x64xf32>, vector<64x64xf32> -> vector<64x64xf32>
    %9 = vector.extract_strided_slice %3 {offsets = [64, 0], sizes = [64, 8], strides = [1, 1]} : vector<128x8xf32> to vector<64x8xf32>
    %10 = vector.extract_strided_slice %5 {offsets = [0, 64], sizes = [8, 64], strides = [1, 1]} : vector<8x256xf32> to vector<8x64xf32>
    %cst_8 = arith.constant dense<0.000000e+00> : vector<64x64xf32>
    %11 = tpu.matmul %9, %10, %cst_8 {dimension_numbers = #tpu.dot_dimension_numbers<[1], [0], [0], [1], [0, 0, 1, 1], [], []>} : vector<64x8xf32>, vector<8x64xf32>, vector<64x64xf32> -> vector<64x64xf32>
    %12 = arith.addf %8, %11 : vector<64x64xf32>
    %cst_9 = arith.constant 2.500000e-01 : f32
    %13 = vector.broadcast %cst_9 : f32 to vector<64x64xf32>
    %14 = arith.mulf %12, %13 : vector<64x64xf32>
    %15 = tpu.iota {dimensions = array<i32: 0>} : vector<64x64xi32>
    %16 = tpu.iota {dimensions = array<i32: 1>} : vector<64x64xi32>
    %c7_i32 = arith.constant 7 : i32
    %17 = vector.broadcast %c7_i32 : i32 to vector<64x64xi32>
    %18 = arith.andi %15, %17 : vector<64x64xi32>
    %c7_i32_10 = arith.constant 7 : i32
    %19 = vector.broadcast %c7_i32_10 : i32 to vector<64x64xi32>
    %20 = arith.andi %16, %19 : vector<64x64xi32>
    %21 = arith.cmpi eq, %18, %20 : vector<64x64xi32>
    %cst_11 = arith.constant -1.000000e+30 : f32
    %22 = vector.broadcast %cst_11 : f32 to vector<64x64xf32>
    %23 = arith.select %21, %14, %22 : vector<64x64xi1>, vector<64x64xf32>
    %cst_12 = arith.constant dense<0xFF800000> : vector<64xf32>
    %24 = vector.multi_reduction <maximumf>, %23, %cst_12 [1] : vector<64x64xf32> to vector<64xf32>
    %25 = vector.shape_cast %24 : vector<64xf32> to vector<64x1xf32>
    %26 = vector.broadcast %25 : vector<64x1xf32> to vector<64x64xf32>
    %27 = arith.subf %23, %26 : vector<64x64xf32>
    %28 = math.exp %27 : vector<64x64xf32>
    %cst_13 = arith.constant dense<0.000000e+00> : vector<64xf32>
    %29 = vector.multi_reduction <add>, %28, %cst_13 [1] : vector<64x64xf32> to vector<64xf32>
    %30 = vector.shape_cast %29 : vector<64xf32> to vector<64x1xf32>
    %31 = tpu.reciprocal %30 {approx = true} : vector<64x1xf32> -> vector<64x1xf32>
    %32 = vector.broadcast %31 : vector<64x1xf32> to vector<64x64xf32>
    %33 = arith.mulf %28, %32 : vector<64x64xf32>
    %34 = vector.extract_strided_slice %5 {offsets = [0, 128], sizes = [8, 64], strides = [1, 1]} : vector<8x256xf32> to vector<8x64xf32>
    %cst_14 = arith.constant dense<0.000000e+00> : vector<64x8xf32>
    %35 = tpu.matmul %33, %34, %cst_14 {dimension_numbers = #tpu.dot_dimension_numbers<[1], [1], [0], [0], [0, 0, 1, 0], [], []>} : vector<64x64xf32>, vector<8x64xf32>, vector<64x8xf32> -> vector<64x8xf32>
    %36 = vector.extract_strided_slice %5 {offsets = [0, 192], sizes = [8, 64], strides = [1, 1]} : vector<8x256xf32> to vector<8x64xf32>
    %cst_15 = arith.constant dense<0.000000e+00> : vector<64x8xf32>
    %37 = tpu.matmul %33, %36, %cst_15 {dimension_numbers = #tpu.dot_dimension_numbers<[1], [1], [0], [0], [0, 0, 1, 0], [], []>} : vector<64x64xf32>, vector<8x64xf32>, vector<64x8xf32> -> vector<64x8xf32>
    %cst_16 = arith.constant 0.000000e+00 : f32
    %38 = vector.broadcast %cst_16 : f32 to vector<8x32xf32>
    %39 = vector.extract_strided_slice %35 {offsets = [0, 0], sizes = [8, 8], strides = [1, 1]} : vector<64x8xf32> to vector<8x8xf32>
    %c0_17 = arith.constant 0 : index
    %c0_18 = arith.constant 0 : index
    %c0_19 = arith.constant 0 : index
    %40 = vector.load %arg4[%c0_17, %c0_18, %c0_19] : memref<16x8x32xf32, #tpu.memory_space<vmem>>, vector<1x8x32xf32>
    %41 = vector.shape_cast %40 : vector<1x8x32xf32> to vector<8x32xf32>
    %cst_20 = arith.constant dense<0.000000e+00> : vector<8x32xf32>
    %42 = tpu.matmul %39, %41, %cst_20 {dimension_numbers = #tpu.dot_dimension_numbers<[1], [0], [0], [1], [0, 0, 1, 1], [], []>} : vector<8x8xf32>, vector<8x32xf32>, vector<8x32xf32> -> vector<8x32xf32>
    %43 = arith.addf %38, %42 : vector<8x32xf32>
    %44 = vector.extract_strided_slice %37 {offsets = [0, 0], sizes = [8, 8], strides = [1, 1]} : vector<64x8xf32> to vector<8x8xf32>
    %c1 = arith.constant 1 : index
    %c0_21 = arith.constant 0 : index
    %c0_22 = arith.constant 0 : index
    %45 = vector.load %arg4[%c1, %c0_21, %c0_22] : memref<16x8x32xf32, #tpu.memory_space<vmem>>, vector<1x8x32xf32>
    %46 = vector.shape_cast %45 : vector<1x8x32xf32> to vector<8x32xf32>
    %cst_23 = arith.constant dense<0.000000e+00> : vector<8x32xf32>
    %47 = tpu.matmul %44, %46, %cst_23 {dimension_numbers = #tpu.dot_dimension_numbers<[1], [0], [0], [1], [0, 0, 1, 1], [], []>} : vector<8x8xf32>, vector<8x32xf32>, vector<8x32xf32> -> vector<8x32xf32>
    %48 = arith.addf %43, %47 : vector<8x32xf32>
    %49 = vector.extract_strided_slice %35 {offsets = [8, 0], sizes = [8, 8], strides = [1, 1]} : vector<64x8xf32> to vector<8x8xf32>
    %c2 = arith.constant 2 : index
    %c0_24 = arith.constant 0 : index
    %c0_25 = arith.constant 0 : index
    %50 = vector.load %arg4[%c2, %c0_24, %c0_25] : memref<16x8x32xf32, #tpu.memory_space<vmem>>, vector<1x8x32xf32>
    %51 = vector.shape_cast %50 : vector<1x8x32xf32> to vector<8x32xf32>
    %cst_26 = arith.constant dense<0.000000e+00> : vector<8x32xf32>
    %52 = tpu.matmul %49, %51, %cst_26 {dimension_numbers = #tpu.dot_dimension_numbers<[1], [0], [0], [1], [0, 0, 1, 1], [], []>} : vector<8x8xf32>, vector<8x32xf32>, vector<8x32xf32> -> vector<8x32xf32>
    %53 = arith.addf %48, %52 : vector<8x32xf32>
    %54 = vector.extract_strided_slice %37 {offsets = [8, 0], sizes = [8, 8], strides = [1, 1]} : vector<64x8xf32> to vector<8x8xf32>
    %c3 = arith.constant 3 : index
    %c0_27 = arith.constant 0 : index
    %c0_28 = arith.constant 0 : index
    %55 = vector.load %arg4[%c3, %c0_27, %c0_28] : memref<16x8x32xf32, #tpu.memory_space<vmem>>, vector<1x8x32xf32>
    %56 = vector.shape_cast %55 : vector<1x8x32xf32> to vector<8x32xf32>
    %cst_29 = arith.constant dense<0.000000e+00> : vector<8x32xf32>
    %57 = tpu.matmul %54, %56, %cst_29 {dimension_numbers = #tpu.dot_dimension_numbers<[1], [0], [0], [1], [0, 0, 1, 1], [], []>} : vector<8x8xf32>, vector<8x32xf32>, vector<8x32xf32> -> vector<8x32xf32>
    %58 = arith.addf %53, %57 : vector<8x32xf32>
    %59 = vector.extract_strided_slice %35 {offsets = [16, 0], sizes = [8, 8], strides = [1, 1]} : vector<64x8xf32> to vector<8x8xf32>
    %c4 = arith.constant 4 : index
    %c0_30 = arith.constant 0 : index
    %c0_31 = arith.constant 0 : index
    %60 = vector.load %arg4[%c4, %c0_30, %c0_31] : memref<16x8x32xf32, #tpu.memory_space<vmem>>, vector<1x8x32xf32>
    %61 = vector.shape_cast %60 : vector<1x8x32xf32> to vector<8x32xf32>
    %cst_32 = arith.constant dense<0.000000e+00> : vector<8x32xf32>
    %62 = tpu.matmul %59, %61, %cst_32 {dimension_numbers = #tpu.dot_dimension_numbers<[1], [0], [0], [1], [0, 0, 1, 1], [], []>} : vector<8x8xf32>, vector<8x32xf32>, vector<8x32xf32> -> vector<8x32xf32>
    %63 = arith.addf %58, %62 : vector<8x32xf32>
    %64 = vector.extract_strided_slice %37 {offsets = [16, 0], sizes = [8, 8], strides = [1, 1]} : vector<64x8xf32> to vector<8x8xf32>
    %c5 = arith.constant 5 : index
    %c0_33 = arith.constant 0 : index
    %c0_34 = arith.constant 0 : index
    %65 = vector.load %arg4[%c5, %c0_33, %c0_34] : memref<16x8x32xf32, #tpu.memory_space<vmem>>, vector<1x8x32xf32>
    %66 = vector.shape_cast %65 : vector<1x8x32xf32> to vector<8x32xf32>
    %cst_35 = arith.constant dense<0.000000e+00> : vector<8x32xf32>
    %67 = tpu.matmul %64, %66, %cst_35 {dimension_numbers = #tpu.dot_dimension_numbers<[1], [0], [0], [1], [0, 0, 1, 1], [], []>} : vector<8x8xf32>, vector<8x32xf32>, vector<8x32xf32> -> vector<8x32xf32>
    %68 = arith.addf %63, %67 : vector<8x32xf32>
    %69 = vector.extract_strided_slice %35 {offsets = [24, 0], sizes = [8, 8], strides = [1, 1]} : vector<64x8xf32> to vector<8x8xf32>
    %c6 = arith.constant 6 : index
    %c0_36 = arith.constant 0 : index
    %c0_37 = arith.constant 0 : index
    %70 = vector.load %arg4[%c6, %c0_36, %c0_37] : memref<16x8x32xf32, #tpu.memory_space<vmem>>, vector<1x8x32xf32>
    %71 = vector.shape_cast %70 : vector<1x8x32xf32> to vector<8x32xf32>
    %cst_38 = arith.constant dense<0.000000e+00> : vector<8x32xf32>
    %72 = tpu.matmul %69, %71, %cst_38 {dimension_numbers = #tpu.dot_dimension_numbers<[1], [0], [0], [1], [0, 0, 1, 1], [], []>} : vector<8x8xf32>, vector<8x32xf32>, vector<8x32xf32> -> vector<8x32xf32>
    %73 = arith.addf %68, %72 : vector<8x32xf32>
    %74 = vector.extract_strided_slice %37 {offsets = [24, 0], sizes = [8, 8], strides = [1, 1]} : vector<64x8xf32> to vector<8x8xf32>
    %c7 = arith.constant 7 : index
    %c0_39 = arith.constant 0 : index
    %c0_40 = arith.constant 0 : index
    %75 = vector.load %arg4[%c7, %c0_39, %c0_40] : memref<16x8x32xf32, #tpu.memory_space<vmem>>, vector<1x8x32xf32>
    %76 = vector.shape_cast %75 : vector<1x8x32xf32> to vector<8x32xf32>
    %cst_41 = arith.constant dense<0.000000e+00> : vector<8x32xf32>
    %77 = tpu.matmul %74, %76, %cst_41 {dimension_numbers = #tpu.dot_dimension_numbers<[1], [0], [0], [1], [0, 0, 1, 1], [], []>} : vector<8x8xf32>, vector<8x32xf32>, vector<8x32xf32> -> vector<8x32xf32>
    %78 = arith.addf %73, %77 : vector<8x32xf32>
    %79 = vector.extract_strided_slice %35 {offsets = [32, 0], sizes = [8, 8], strides = [1, 1]} : vector<64x8xf32> to vector<8x8xf32>
    %c8 = arith.constant 8 : index
    %c0_42 = arith.constant 0 : index
    %c0_43 = arith.constant 0 : index
    %80 = vector.load %arg4[%c8, %c0_42, %c0_43] : memref<16x8x32xf32, #tpu.memory_space<vmem>>, vector<1x8x32xf32>
    %81 = vector.shape_cast %80 : vector<1x8x32xf32> to vector<8x32xf32>
    %cst_44 = arith.constant dense<0.000000e+00> : vector<8x32xf32>
    %82 = tpu.matmul %79, %81, %cst_44 {dimension_numbers = #tpu.dot_dimension_numbers<[1], [0], [0], [1], [0, 0, 1, 1], [], []>} : vector<8x8xf32>, vector<8x32xf32>, vector<8x32xf32> -> vector<8x32xf32>
    %83 = arith.addf %78, %82 : vector<8x32xf32>
    %84 = vector.extract_strided_slice %37 {offsets = [32, 0], sizes = [8, 8], strides = [1, 1]} : vector<64x8xf32> to vector<8x8xf32>
    %c9 = arith.constant 9 : index
    %c0_45 = arith.constant 0 : index
    %c0_46 = arith.constant 0 : index
    %85 = vector.load %arg4[%c9, %c0_45, %c0_46] : memref<16x8x32xf32, #tpu.memory_space<vmem>>, vector<1x8x32xf32>
    %86 = vector.shape_cast %85 : vector<1x8x32xf32> to vector<8x32xf32>
    %cst_47 = arith.constant dense<0.000000e+00> : vector<8x32xf32>
    %87 = tpu.matmul %84, %86, %cst_47 {dimension_numbers = #tpu.dot_dimension_numbers<[1], [0], [0], [1], [0, 0, 1, 1], [], []>} : vector<8x8xf32>, vector<8x32xf32>, vector<8x32xf32> -> vector<8x32xf32>
    %88 = arith.addf %83, %87 : vector<8x32xf32>
    %89 = vector.extract_strided_slice %35 {offsets = [40, 0], sizes = [8, 8], strides = [1, 1]} : vector<64x8xf32> to vector<8x8xf32>
    %c10 = arith.constant 10 : index
    %c0_48 = arith.constant 0 : index
    %c0_49 = arith.constant 0 : index
    %90 = vector.load %arg4[%c10, %c0_48, %c0_49] : memref<16x8x32xf32, #tpu.memory_space<vmem>>, vector<1x8x32xf32>
    %91 = vector.shape_cast %90 : vector<1x8x32xf32> to vector<8x32xf32>
    %cst_50 = arith.constant dense<0.000000e+00> : vector<8x32xf32>
    %92 = tpu.matmul %89, %91, %cst_50 {dimension_numbers = #tpu.dot_dimension_numbers<[1], [0], [0], [1], [0, 0, 1, 1], [], []>} : vector<8x8xf32>, vector<8x32xf32>, vector<8x32xf32> -> vector<8x32xf32>
    %93 = arith.addf %88, %92 : vector<8x32xf32>
    %94 = vector.extract_strided_slice %37 {offsets = [40, 0], sizes = [8, 8], strides = [1, 1]} : vector<64x8xf32> to vector<8x8xf32>
    %c11 = arith.constant 11 : index
    %c0_51 = arith.constant 0 : index
    %c0_52 = arith.constant 0 : index
    %95 = vector.load %arg4[%c11, %c0_51, %c0_52] : memref<16x8x32xf32, #tpu.memory_space<vmem>>, vector<1x8x32xf32>
    %96 = vector.shape_cast %95 : vector<1x8x32xf32> to vector<8x32xf32>
    %cst_53 = arith.constant dense<0.000000e+00> : vector<8x32xf32>
    %97 = tpu.matmul %94, %96, %cst_53 {dimension_numbers = #tpu.dot_dimension_numbers<[1], [0], [0], [1], [0, 0, 1, 1], [], []>} : vector<8x8xf32>, vector<8x32xf32>, vector<8x32xf32> -> vector<8x32xf32>
    %98 = arith.addf %93, %97 : vector<8x32xf32>
    %99 = vector.extract_strided_slice %35 {offsets = [48, 0], sizes = [8, 8], strides = [1, 1]} : vector<64x8xf32> to vector<8x8xf32>
    %c12 = arith.constant 12 : index
    %c0_54 = arith.constant 0 : index
    %c0_55 = arith.constant 0 : index
    %100 = vector.load %arg4[%c12, %c0_54, %c0_55] : memref<16x8x32xf32, #tpu.memory_space<vmem>>, vector<1x8x32xf32>
    %101 = vector.shape_cast %100 : vector<1x8x32xf32> to vector<8x32xf32>
    %cst_56 = arith.constant dense<0.000000e+00> : vector<8x32xf32>
    %102 = tpu.matmul %99, %101, %cst_56 {dimension_numbers = #tpu.dot_dimension_numbers<[1], [0], [0], [1], [0, 0, 1, 1], [], []>} : vector<8x8xf32>, vector<8x32xf32>, vector<8x32xf32> -> vector<8x32xf32>
    %103 = arith.addf %98, %102 : vector<8x32xf32>
    %104 = vector.extract_strided_slice %37 {offsets = [48, 0], sizes = [8, 8], strides = [1, 1]} : vector<64x8xf32> to vector<8x8xf32>
    %c13 = arith.constant 13 : index
    %c0_57 = arith.constant 0 : index
    %c0_58 = arith.constant 0 : index
    %105 = vector.load %arg4[%c13, %c0_57, %c0_58] : memref<16x8x32xf32, #tpu.memory_space<vmem>>, vector<1x8x32xf32>
    %106 = vector.shape_cast %105 : vector<1x8x32xf32> to vector<8x32xf32>
    %cst_59 = arith.constant dense<0.000000e+00> : vector<8x32xf32>
    %107 = tpu.matmul %104, %106, %cst_59 {dimension_numbers = #tpu.dot_dimension_numbers<[1], [0], [0], [1], [0, 0, 1, 1], [], []>} : vector<8x8xf32>, vector<8x32xf32>, vector<8x32xf32> -> vector<8x32xf32>
    %108 = arith.addf %103, %107 : vector<8x32xf32>
    %109 = vector.extract_strided_slice %35 {offsets = [56, 0], sizes = [8, 8], strides = [1, 1]} : vector<64x8xf32> to vector<8x8xf32>
    %c14 = arith.constant 14 : index
    %c0_60 = arith.constant 0 : index
    %c0_61 = arith.constant 0 : index
    %110 = vector.load %arg4[%c14, %c0_60, %c0_61] : memref<16x8x32xf32, #tpu.memory_space<vmem>>, vector<1x8x32xf32>
    %111 = vector.shape_cast %110 : vector<1x8x32xf32> to vector<8x32xf32>
    %cst_62 = arith.constant dense<0.000000e+00> : vector<8x32xf32>
    %112 = tpu.matmul %109, %111, %cst_62 {dimension_numbers = #tpu.dot_dimension_numbers<[1], [0], [0], [1], [0, 0, 1, 1], [], []>} : vector<8x8xf32>, vector<8x32xf32>, vector<8x32xf32> -> vector<8x32xf32>
    %113 = arith.addf %108, %112 : vector<8x32xf32>
    %114 = vector.extract_strided_slice %37 {offsets = [56, 0], sizes = [8, 8], strides = [1, 1]} : vector<64x8xf32> to vector<8x8xf32>
    %c15 = arith.constant 15 : index
    %c0_63 = arith.constant 0 : index
    %c0_64 = arith.constant 0 : index
    %115 = vector.load %arg4[%c15, %c0_63, %c0_64] : memref<16x8x32xf32, #tpu.memory_space<vmem>>, vector<1x8x32xf32>
    %116 = vector.shape_cast %115 : vector<1x8x32xf32> to vector<8x32xf32>
    %cst_65 = arith.constant dense<0.000000e+00> : vector<8x32xf32>
    %117 = tpu.matmul %114, %116, %cst_65 {dimension_numbers = #tpu.dot_dimension_numbers<[1], [0], [0], [1], [0, 0, 1, 1], [], []>} : vector<8x8xf32>, vector<8x32xf32>, vector<8x32xf32> -> vector<8x32xf32>
    %118 = arith.addf %113, %117 : vector<8x32xf32>
    %c0_66 = arith.constant 0 : index
    %c0_67 = arith.constant 0 : index
    %119 = vector.load %arg5[%c0_66, %c0_67] : memref<1x32xf32, #tpu.memory_space<vmem>>, vector<1x32xf32>
    %120 = vector.broadcast %119 : vector<1x32xf32> to vector<8x32xf32>
    %121 = arith.addf %118, %120 : vector<8x32xf32>
    %c0_68 = arith.constant 0 : index
    %c0_69 = arith.constant 0 : index
    %c0_70 = arith.constant 0 : index
    %122 = vector.load %arg6[%c0_68, %c0_69, %c0_70] : memref<1x8x32xf32, #tpu.memory_space<vmem>>, vector<1x8x32xf32>
    %123 = vector.shape_cast %122 : vector<1x8x32xf32> to vector<8x32xf32>
    %124 = vector.shape_cast %121 : vector<8x32xf32> to vector<1x8x32xf32>
    tpu.vector_store %arg6[%c0_68, %c0_69, %c0_70], %124 {strides = array<i32>} : memref<1x8x32xf32, #tpu.memory_space<vmem>>, vector<1x8x32xf32>,
    return
  }
  func.func @transform_0(%arg0: i32) -> (i32, i32, i32) {
    %c0_i32 = arith.constant 0 : i32
    %c0_i32_0 = arith.constant 0 : i32
    %c0_i32_1 = arith.constant 0 : i32
    return %arg0, %c0_i32, %c0_i32_0 : i32, i32, i32
  }
  func.func @transform_1(%arg0: i32) -> (i32, i32) {
    %c0_i32 = arith.constant 0 : i32
    %c0_i32_0 = arith.constant 0 : i32
    %c0_i32_1 = arith.constant 0 : i32
    return %c0_i32, %c0_i32_0 : i32, i32
  }
  func.func @transform_2(%arg0: i32) -> (i32, i32) {
    %c0_i32 = arith.constant 0 : i32
    %c0_i32_0 = arith.constant 0 : i32
    %c0_i32_1 = arith.constant 0 : i32
    return %c0_i32, %c0_i32_0 : i32, i32
  }
  func.func @transform_3(%arg0: i32) -> (i32, i32, i32) {
    %c0_i32 = arith.constant 0 : i32
    %c0_i32_0 = arith.constant 0 : i32
    %c0_i32_1 = arith.constant 0 : i32
    %c0_i32_2 = arith.constant 0 : i32
    return %c0_i32, %c0_i32_0, %c0_i32_1 : i32, i32, i32
  }
  func.func @transform_4(%arg0: i32) -> (i32, i32) {
    %c0_i32 = arith.constant 0 : i32
    %c0_i32_0 = arith.constant 0 : i32
    %c0_i32_1 = arith.constant 0 : i32
    return %c0_i32, %c0_i32_0 : i32, i32
  }
  func.func @transform_5(%arg0: i32) -> (i32, i32, i32) {
    %c0_i32 = arith.constant 0 : i32
    %c0_i32_0 = arith.constant 0 : i32
    %c0_i32_1 = arith.constant 0 : i32
    return %arg0, %c0_i32, %c0_i32_0 : i32, i32, i32
  }
}

</mosaic_0001>

<llo_original>
// kernel: attention_forward.1
$region0: #{attention_forward.1}
  #allocation0 [shape = 'u32[]', space=smem, size = 0x4, offset = 0x4, fixed_abs, tag = 'smem constant byte address 0x4 - core index']
  #allocation1 [shape = 'u32[144,128]{1,0:T(1,128)}', space=vmem, size = 0x12000, scoped, tag = 'internal scratch']
  %s0 = inlined_call_operand.vmem [shape: f32[2,8,32], index: 0, kind: input, shape index: {}]
  %s1 = inlined_call_operand.vmem [shape: f32[128,32], index: 1, kind: input, shape index: {}]
  %s2 = inlined_call_operand.vmem [shape: f32[32,256], index: 2, kind: input, shape index: {}]
  %s3 = inlined_call_operand.vmem [shape: f32[16,8,32], index: 3, kind: input, shape index: {}]
  %s4 = inlined_call_operand.vmem [shape: f32[1,32], index: 4, kind: input, shape index: {}]
  %s5 = inlined_call_operand.hbm [shape: f32[2,8,32], index: 5, kind: output, shape index: {}]
  %s6 = sld [smem:[#allocation0]]
  $region53: #{attention_forward.1} parent=0
    _
  %s8 = ssub.s32 1, %s6
  %s9 = scalar_select 0, %s8, %s6
  $region1: #{attention_forward.1} parent=0
    #allocation2 [shape = 'u8[8192]{0}', space=vmem, size = 0x2000, scoped, tag = 'output window, operand 0']
    #allocation3 [shape = 's32[2]{0}', space=sflag, size = 0x8, scoped, tag = 'scoped memory for attention_forward.1']
    %10 = vsyncpa [#allocation3], 0
    %s11 = scalar_lea.sflag [#allocation3], 1
    %12 = vsyncpa %s11, 0
    loop: start=0, step=1, limit=4
    $region2: #{attention_forward.1} parent=1 // loop_pre_header
      _
    $region3: #{attention_forward.1} parent=1 // loop_header
      %s14 = sphi 0, %s18
      %p15 = scmp.ge.s32.totalorder %s14, 4
      %s24 = sphi 0, %s26
      %s27 = sphi 0, %s24
      %s28 = sphi 0, %s27
      %s44 = sphi 0, %s28
      %s48 = sphi 0, %s48
      %s50 = sphi 0, %s48
      %s51 = sphi 0, %s50
      %s65 = sphi 0, %s51
      %s69 = sphi 0, %s69
      %s71 = sphi 0, %s69
      %s72 = sphi 0, %s71
      %s86 = sphi 0, %s72
      %s90 = sphi 0, %s90
      %s92 = sphi 0, %s90
      %s93 = sphi 0, %s92
      %s107 = sphi 0, %s93
      %s111 = sphi 0, %s111
      %s113 = sphi 0, %s111
      %s114 = sphi 0, %s113
      %s128 = sphi 0, %s114
      %s134 = sphi 0, %s136
      %s137 = sphi 0, %s134
      %s138 = sphi 0, %s137
      %s154 = sphi 0, %s138
    $region4: #{attention_forward.1} parent=1 // loop_header_branch
      %17 = sbr.rel (%p15) target = $region8
    $region5: #{attention_forward.1} parent=1 // loop_body
      %s19 = ssub.s32 %s14, 1
      %s20 = ssub.s32 %s14, 2
      %s21 = sadd.s32 %s14, 1
      %s22 = ssub.s32 %s14, %s21
      %p23 = scmp.eq.s32.totalorder %s22, 0
      %s25 = sadd.s32 %s24, 1
      %s26 = scalar_select %p23, %s24, %s25
      %p29 = pneg %p23
      %p30 = scmp.eq.s32.totalorder %s14, 1
      %p31 = por %p29, %p30
      %p32 = scmp.ne.s32.totalorder %s24, %s27
      %p33 = scmp.eq.s32.totalorder %s14, 0
      %p34 = por %p32, %p33
      %p35 = scmp.ne.s32.totalorder %s24, %s27
      %p36 = scmp.eq.s32.totalorder %s19, 1
      %p37 = por %p35, %p36
      %p38 = scmp.ne.s32.totalorder %s27, %s28
      %p39 = scmp.eq.s32.totalorder %s19, 0
      %p40 = por %p38, %p39
      %p41 = scmp.ne.s32.totalorder %s27, %s28
      %p42 = scmp.eq.s32.totalorder %s20, 1
      %p43 = por %p41, %p42
      %p45 = scmp.ne.s32.totalorder %s28, %s44
      %p46 = scmp.eq.s32.totalorder %s20, 0
      %p47 = por %p45, %p46
      %s49 = sadd.s32 %s48, 1
      %p52 = scmp.eq.s32.totalorder %s14, 1
      %p53 = scmp.ne.s32.totalorder %s48, %s50
      %p54 = scmp.eq.s32.totalorder %s14, 0
      %p55 = por %p53, %p54
      %p56 = scmp.ne.s32.totalorder %s48, %s50
      %p57 = scmp.eq.s32.totalorder %s19, 1
      %p58 = por %p56, %p57
      %p59 = scmp.ne.s32.totalorder %s50, %s51
      %p60 = scmp.eq.s32.totalorder %s19, 0
      %p61 = por %p59, %p60
      %p62 = scmp.ne.s32.totalorder %s50, %s51
      %p63 = scmp.eq.s32.totalorder %s20, 1
      %p64 = por %p62, %p63
      %p66 = scmp.ne.s32.totalorder %s51, %s65
      %p67 = scmp.eq.s32.totalorder %s20, 0
      %p68 = por %p66, %p67
      %s70 = sadd.s32 %s69, 1
      %p73 = scmp.eq.s32.totalorder %s14, 1
      %p74 = scmp.ne.s32.totalorder %s69, %s71
      %p75 = scmp.eq.s32.totalorder %s14, 0
      %p76 = por %p74, %p75
      %p77 = scmp.ne.s32.totalorder %s69, %s71
      %p78 = scmp.eq.s32.totalorder %s19, 1
      %p79 = por %p77, %p78
      %p80 = scmp.ne.s32.totalorder %s71, %s72
      %p81 = scmp.eq.s32.totalorder %s19, 0
      %p82 = por %p80, %p81
      %p83 = scmp.ne.s32.totalorder %s71, %s72
      %p84 = scmp.eq.s32.totalorder %s20, 1
      %p85 = por %p83, %p84
      %p87 = scmp.ne.s32.totalorder %s72, %s86
      %p88 = scmp.eq.s32.totalorder %s20, 0
      %p89 = por %p87, %p88
      %s91 = sadd.s32 %s90, 1
      %p94 = scmp.eq.s32.totalorder %s14, 1
      %p95 = scmp.ne.s32.totalorder %s90, %s92
      %p96 = scmp.eq.s32.totalorder %s14, 0
      %p97 = por %p95, %p96
      %p98 = scmp.ne.s32.totalorder %s90, %s92
      %p99 = scmp.eq.s32.totalorder %s19, 1
      %p100 = por %p98, %p99
      %p101 = scmp.ne.s32.totalorder %s92, %s93
      %p102 = scmp.eq.s32.totalorder %s19, 0
      %p103 = por %p101, %p102
      %p104 = scmp.ne.s32.totalorder %s92, %s93
      %p105 = scmp.eq.s32.totalorder %s20, 1
      %p106 = por %p104, %p105
      %p108 = scmp.ne.s32.totalorder %s93, %s107
      %p109 = scmp.eq.s32.totalorder %s20, 0
      %p110 = por %p108, %p109
      %s112 = sadd.s32 %s111, 1
      %p115 = scmp.eq.s32.totalorder %s14, 1
      %p116 = scmp.ne.s32.totalorder %s111, %s113
      %p117 = scmp.eq.s32.totalorder %s14, 0
      %p118 = por %p116, %p117
      %p119 = scmp.ne.s32.totalorder %s111, %s113
      %p120 = scmp.eq.s32.totalorder %s19, 1
      %p121 = por %p119, %p120
      %p122 = scmp.ne.s32.totalorder %s113, %s114
      %p123 = scmp.eq.s32.totalorder %s19, 0
      %p124 = por %p122, %p123
      %p125 = scmp.ne.s32.totalorder %s113, %s114
      %p126 = scmp.eq.s32.totalorder %s20, 1
      %p127 = por %p125, %p126
      %p129 = scmp.ne.s32.totalorder %s114, %s128
      %p130 = scmp.eq.s32.totalorder %s20, 0
      %p131 = por %p129, %p130
      %s132 = ssub.s32 %s14, %s21
      %p133 = scmp.eq.s32.totalorder %s132, 0
      %s135 = sadd.s32 %s134, 1
      %s136 = scalar_select %p133, %s134, %s135
      %p139 = pneg %p133
      %p140 = scmp.eq.s32.totalorder %s14, 1
      %p141 = por %p139, %p140
      %p142 = scmp.ne.s32.totalorder %s134, %s137
      %p143 = scmp.eq.s32.totalorder %s14, 0
      %p144 = por %p142, %p143
      %p145 = scmp.ne.s32.totalorder %s134, %s137
      %p146 = scmp.eq.s32.totalorder %s19, 1
      %p147 = por %p145, %p146
      %p148 = scmp.ne.s32.totalorder %s137, %s138
      %p149 = scmp.eq.s32.totalorder %s19, 0
      %p150 = por %p148, %p149
      %p151 = scmp.ne.s32.totalorder %s137, %s138
      %p152 = scmp.eq.s32.totalorder %s20, 1
      %p153 = por %p151, %p152
      %p155 = scmp.ne.s32.totalorder %s138, %s154
      %p156 = scmp.eq.s32.totalorder %s20, 0
      %p157 = por %p155, %p156
      %p158 = scmp.le.s32.totalorder 1, %s14
      %p159 = scmp.lt.s32.totalorder %s14, 3
      %p160 = pnand %p158, %p159
      %p161 = pneg %p160
      // Predicated region
      $region9: #{attention_forward.1} parent=5 // pred_check
        _
      $region10: #{attention_forward.1} parent=5 // pred_check_branch
        %163 = sbr.rel (%p160) target = $region12
      $region11: #{attention_forward.1} parent=5 // pred_region
        %s164 = ssub.s32 %s14, 1
        // Predicated region
        $region13: #{attention_forward.1} parent=11 // pred_check
          %p165 = pneg %p61
        $region14: #{attention_forward.1} parent=11 // pred_check_branch
          %167 = sbr.rel (%p165) target = $region16
        $region15: #{attention_forward.1} parent=11 // pred_region
          _
        $region16: #{attention_forward.1} parent=11 // pred_fallthru
          _
        // Predicated region
        $region17: #{attention_forward.1} parent=11 // pred_check
          %p168 = pneg %p82
        $region18: #{attention_forward.1} parent=11 // pred_check_branch
          %170 = sbr.rel (%p168) target = $region20
        $region19: #{attention_forward.1} parent=11 // pred_region
          _
        $region20: #{attention_forward.1} parent=11 // pred_fallthru
          _
        // Predicated region
        $region21: #{attention_forward.1} parent=11 // pred_check
          %p171 = pneg %p103
        $region22: #{attention_forward.1} parent=11 // pred_check_branch
          %173 = sbr.rel (%p171) target = $region24
        $region23: #{attention_forward.1} parent=11 // pred_region
          _
        $region24: #{attention_forward.1} parent=11 // pred_fallthru
          _
        // Predicated region
        $region25: #{attention_forward.1} parent=11 // pred_check
          %p174 = pneg %p124
        $region26: #{attention_forward.1} parent=11 // pred_check_branch
          %176 = sbr.rel (%p174) target = $region28
        $region27: #{attention_forward.1} parent=11 // pred_region
          _
        $region28: #{attention_forward.1} parent=11 // pred_fallthru
          _
      $region12: #{attention_forward.1} parent=5 // pred_fallthru
        _
      %p177 = scmp.lt.s32.totalorder %s14, 2
      // Predicated region
      $region29: #{attention_forward.1} parent=5 // pred_check
        %p178 = pneg %p177
      $region30: #{attention_forward.1} parent=5 // pred_check_branch
        %180 = sbr.rel (%p178) target = $region32
      $region31: #{attention_forward.1} parent=5 // pred_region
        // Predicated region
        $region33: #{attention_forward.1} parent=31 // pred_check
          %p181 = pneg %p34
        $region34: #{attention_forward.1} parent=31 // pred_check_branch
          %183 = sbr.rel (%p181) target = $region36
        $region35: #{attention_forward.1} parent=31 // pred_region
          %p184 = scmp.lt.s32.totalorder %s14, 1
          %s185 = scalar_select %p184, %s14, 1
          %s186 = smul.addr %s185, 8
          %s187 = scalar_lea.vmem %s0, %s186
        $region36: #{attention_forward.1} parent=31 // pred_fallthru
          _
      $region32: #{attention_forward.1} parent=5 // pred_fallthru
        _
      %p188 = scmp.le.s32.totalorder 1, %s14
      %p189 = scmp.lt.s32.totalorder %s14, 3
      %p190 = pnand %p188, %p189
      %p191 = pneg %p190
      // Predicated region
      $region37: #{attention_forward.1} parent=5 // pred_check
        _
      $region38: #{attention_forward.1} parent=5 // pred_check_branch
        %193 = sbr.rel (%p190) target = $region40
      $region39: #{attention_forward.1} parent=5 // pred_region
        %s194 = ssub.s32 %s14, 1
        %p195 = scmp.lt.s32.totalorder %s19, 1
        %s196 = scalar_select %p195, %s19, 1
        %s197 = smul.addr %s196, 8
        %s198 = scalar_lea.vmem %s0, %s197
        %p199 = pneg %p40
        %p200 = pneg %p37
        %p201 = pneg %p61
        %p202 = pneg %p58
        %p203 = pneg %p82
        %p204 = pneg %p79
        %p205 = pneg %p103
        %p206 = pneg %p100
        %p207 = pneg %p124
        %p208 = pneg %p121
        %p209 = pneg %p150
        %p210 = pneg %p147
        %s211 = sand.u32 %s137, 1
        %s212 = scalar_lea.sflag [#allocation3], %s211
        %s213 = sand.u32 %s137, 1
        %s214 = smul.addr %s213, 8
        %s215 = scalar_lea.vmem [#allocation2], %s214
        %p216 = scmp.lt.s32.totalorder %s19, 1
        %s217 = scalar_select %p216, %s19, 1
        %s218 = smul.addr %s217, 8
        %s219 = scalar_lea.vmem %s0, %s218
        %v220 = vld [vmem:[%s219] sm:$0xff]
        %v221 = vld [vmem:[%s1] sm:$0xff]
        %v222 = vld [vmem:[%s1 + $0x8] sm:$0xff]
        %v223 = vld [vmem:[%s1 + $0x10] sm:$0xff]
        %v224 = vld [vmem:[%s1 + $0x18] sm:$0xff]
        %v225 = vld [vmem:[%s1 + $0x20] sm:$0xff]
        %v226 = vld [vmem:[%s1 + $0x28] sm:$0xff]
        %v227 = vld [vmem:[%s1 + $0x30] sm:$0xff]
        %v228 = vld [vmem:[%s1 + $0x38] sm:$0xff]
        %v229 = vld [vmem:[%s1 + $0x40] sm:$0xff]
        %v230 = vld [vmem:[%s1 + $0x48] sm:$0xff]
        %v231 = vld [vmem:[%s1 + $0x50] sm:$0xff]
        %v232 = vld [vmem:[%s1 + $0x58] sm:$0xff]
        %v233 = vld [vmem:[%s1 + $0x60] sm:$0xff]
        %v234 = vld [vmem:[%s1 + $0x68] sm:$0xff]
        %v235 = vld [vmem:[%s1 + $0x70] sm:$0xff]
        %v236 = vld [vmem:[%s1 + $0x78] sm:$0xff]
        %vm237 = vcmask 261120
        %v239 = vsel %vm237, %v221, 0
        %v242 = vsel %vm237, %v222, 0
        %v245 = vsel %vm237, %v223, 0
        %v248 = vsel %vm237, %v224, 0
        %v251 = vsel %vm237, %v225, 0
        %v254 = vsel %vm237, %v226, 0
        %v257 = vsel %vm237, %v227, 0
        %v260 = vsel %vm237, %v228, 0
        %v263 = vsel %vm237, %v229, 0
        %v266 = vsel %vm237, %v230, 0
        %v269 = vsel %vm237, %v231, 0
        %v272 = vsel %vm237, %v232, 0
        %v275 = vsel %vm237, %v233, 0
        %v278 = vsel %vm237, %v234, 0
        %v281 = vsel %vm237, %v235, 0
        %v284 = vsel %vm237, %v236, 0
        %v287 = vsel %vm237, %v220, 0
        %289 = vmatprep.subr.mxu0 0.0
        %290 = vmatpush1.xpose.msra.mxu0 %v287
        %291 = vmatprep.subr.mxu0 0.0
        %292 = vmatpush1.xpose.msra.mxu0 0.0
        %293 = vmatprep.subr.mxu0 0.0
        %294 = vmatpush1.xpose.msra.mxu0 0.0
        %295 = vmatprep.subr.mxu0 0.0
        %296 = vmatpush1.xpose.msra.mxu0 0.0
        %297 = vmatprep.subr.mxu0 0.0
        %298 = vmatpush1.xpose.msra.mxu0 0.0
        %299 = vmatprep.subr.mxu0 0.0
        %300 = vmatpush1.xpose.msra.mxu0 0.0
        %301 = vmatprep.subr.mxu0 0.0
        %302 = vmatpush1.xpose.msra.mxu0 0.0
        %303 = vmatprep.subr.mxu0 0.0
        %304 = vmatpush1.xpose.msra.mxu0 0.0
        %305 = vmatprep.subr.mxu0 0.0
        %306 = vmatpush1.xpose.msra.mxu0 0.0
        %307 = vmatprep.subr.mxu0 0.0
        %308 = vmatpush1.xpose.msra.mxu0 0.0
        %309 = vmatprep.subr.mxu0 0.0
        %310 = vmatpush1.xpose.msra.mxu0 0.0
        %311 = vmatprep.subr.mxu0 0.0
        %312 = vmatpush1.xpose.msra.mxu0 0.0
        %313 = vmatprep.subr.mxu0 0.0
        %314 = vmatpush1.xpose.msra.mxu0 0.0
        %315 = vmatprep.subr.mxu0 0.0
        %316 = vmatpush1.xpose.msra.mxu0 0.0
        %317 = vmatprep.subr.mxu0 0.0
        %318 = vmatpush1.xpose.msra.mxu0 0.0
        %319 = vmatprep.subr.mxu0 0.0
        %320 = vmatpush1.xpose.msra.mxu0 0.0
        %321 = vmatprep.subr.mxu0 0.0
        %322 = vmatpush1.xpose.msra.mxu0 0.0
        %323 = vmatprep.subr.mxu0 0.0
        %324 = vmatpush1.xpose.msra.mxu0 0.0
        %325 = vmatprep.subr.mxu0 0.0
        %326 = vmatpush1.xpose.msra.mxu0 0.0
        %327 = vmatprep.subr.mxu0 0.0
        %328 = vmatpush1.xpose.msra.mxu0 0.0
        %329 = vmatprep.subr.mxu0 0.0
        %330 = vmatpush1.xpose.msra.mxu0 0.0
        %331 = vmatprep.subr.mxu0 0.0
        %332 = vmatpush1.xpose.msra.mxu0 0.0
        %333 = vmatprep.subr.mxu0 0.0
        %334 = vmatpush1.xpose.msra.mxu0 0.0
        %335 = vmatprep.subr.mxu0 0.0
        %336 = vmatpush1.xpose.msra.mxu0 0.0
        %337 = vmatprep.subr.mxu0 0.0
        %338 = vmatpush1.xpose.msra.mxu0 0.0
        %339 = vmatprep.subr.mxu0 0.0
        %340 = vmatpush1.xpose.msra.mxu0 0.0
        %341 = vmatprep.subr.mxu0 0.0
        %342 = vmatpush1.xpose.msra.mxu0 0.0
        %343 = vmatprep.subr.mxu0 0.0
        %344 = vmatpush1.xpose.msra.mxu0 0.0
        %345 = vmatprep.subr.mxu0 0.0
        %346 = vmatpush1.xpose.msra.mxu0 0.0
        %347 = vmatprep.subr.mxu0 0.0
        %348 = vmatpush1.xpose.msra.mxu0 0.0
        %349 = vmatprep.subr.mxu0 0.0
        %350 = vmatpush1.xpose.msra.mxu0 0.0
        %351 = vmatprep.subr.mxu0 0.0
        %352 = vmatpush1.xpose.msra.mxu0 0.0
        %353 = vmatprep.mubr.f32.mxu0 0.0
        %354 = vmatmul.mubr.f32.gmra.mrb[0].mxu0 %v239
        %v355 = vpop.f32.mrb[0].mxu0
        %v356 = vadd.f32 0.0, %v355
        %v357 = vpop.f32.mrb[0].mxu0
        %358 = vmatprep.mubr.f32.mxu0 0.0
        %359 = vmatmul.mubr.f32.gmra.mrb[0].mxu0 %v242
        %v360 = vpop.f32.mrb[0].mxu0
        %v361 = vadd.f32 0.0, %v360
        %v362 = vpop.f32.mrb[0].mxu0
        %363 = vmatprep.mubr.f32.mxu0 0.0
        %364 = vmatmul.mubr.f32.gmra.mrb[0].mxu0 %v245
        %v365 = vpop.f32.mrb[0].mxu0
        %v366 = vadd.f32 0.0, %v365
        %v367 = vpop.f32.mrb[0].mxu0
        %368 = vmatprep.mubr.f32.mxu0 0.0
        %369 = vmatmul.mubr.f32.gmra.mrb[0].mxu0 %v248
        %v370 = vpop.f32.mrb[0].mxu0
        %v371 = vadd.f32 0.0, %v370
        %v372 = vpop.f32.mrb[0].mxu0
        %373 = vmatprep.mubr.f32.mxu0 0.0
        %374 = vmatmul.mubr.f32.gmra.mrb[0].mxu0 %v251
        %v375 = vpop.f32.mrb[0].mxu0
        %v376 = vadd.f32 0.0, %v375
        %v377 = vpop.f32.mrb[0].mxu0
        %378 = vmatprep.mubr.f32.mxu0 0.0
        %379 = vmatmul.mubr.f32.gmra.mrb[0].mxu0 %v254
        %v380 = vpop.f32.mrb[0].mxu0
        %v381 = vadd.f32 0.0, %v380
        %v382 = vpop.f32.mrb[0].mxu0
        %383 = vmatprep.mubr.f32.mxu0 0.0
        %384 = vmatmul.mubr.f32.gmra.mrb[0].mxu0 %v257
        %v385 = vpop.f32.mrb[0].mxu0
        %v386 = vadd.f32 0.0, %v385
        %v387 = vpop.f32.mrb[0].mxu0
        %388 = vmatprep.mubr.f32.mxu0 0.0
        %389 = vmatmul.mubr.f32.gmra.mrb[0].mxu0 %v260
        %v390 = vpop.f32.mrb[0].mxu0
        %v391 = vadd.f32 0.0, %v390
        %v392 = vpop.f32.mrb[0].mxu0
        %393 = vmatprep.mubr.f32.mxu0 0.0
        %394 = vmatmul.mubr.f32.gmra.mrb[0].mxu0 %v263
        %v395 = vpop.f32.mrb[0].mxu0
        %v396 = vadd.f32 0.0, %v395
        %v397 = vpop.f32.mrb[0].mxu0
        %398 = vmatprep.mubr.f32.mxu0 0.0
        %399 = vmatmul.mubr.f32.gmra.mrb[0].mxu0 %v266
        %v400 = vpop.f32.mrb[0].mxu0
        %v401 = vadd.f32 0.0, %v400
        %v402 = vpop.f32.mrb[0].mxu0
        %403 = vmatprep.mubr.f32.mxu0 0.0
        %404 = vmatmul.mubr.f32.gmra.mrb[0].mxu0 %v269
        %v405 = vpop.f32.mrb[0].mxu0
        %v406 = vadd.f32 0.0, %v405
        %v407 = vpop.f32.mrb[0].mxu0
        %408 = vmatprep.mubr.f32.mxu0 0.0
        %409 = vmatmul.mubr.f32.gmra.mrb[0].mxu0 %v272
        %v410 = vpop.f32.mrb[0].mxu0
        %v411 = vadd.f32 0.0, %v410
        %v412 = vpop.f32.mrb[0].mxu0
        %413 = vmatprep.mubr.f32.mxu0 0.0
        %414 = vmatmul.mubr.f32.gmra.mrb[0].mxu0 %v275
        %v415 = vpop.f32.mrb[0].mxu0
        %v416 = vadd.f32 0.0, %v415
        %v417 = vpop.f32.mrb[0].mxu0
        %418 = vmatprep.mubr.f32.mxu0 0.0
        %419 = vmatmul.mubr.f32.gmra.mrb[0].mxu0 %v278
        %v420 = vpop.f32.mrb[0].mxu0
        %v421 = vadd.f32 0.0, %v420
        %v422 = vpop.f32.mrb[0].mxu0
        %423 = vmatprep.mubr.f32.mxu0 0.0
        %424 = vmatmul.mubr.f32.gmra.mrb[0].mxu0 %v281
        %v425 = vpop.f32.mrb[0].mxu0
        %v426 = vadd.f32 0.0, %v425
        %v427 = vpop.f32.mrb[0].mxu0
        %428 = vmatprep.mubr.f32.mxu0 0.0
        %429 = vmatmul.mubr.f32.gmra.mrb[0].mxu0 %v284
        %v430 = vpop.f32.mrb[0].mxu0
        %v431 = vadd.f32 0.0, %v430
        %v432 = vpop.f32.mrb[0].mxu0
        %433 = vdwg.mxu0
        %v434 = vld [vmem:[%s2] sm:$0xff]
        %v435 = vld [vmem:[%s2 + $0x8] sm:$0xff]
        %v436 = vld [vmem:[%s2 + $0x10] sm:$0xff]
        %v437 = vld [vmem:[%s2 + $0x18] sm:$0xff]
        %v438 = vld [vmem:[%s2 + $0x20] sm:$0xff]
        %v439 = vld [vmem:[%s2 + $0x28] sm:$0xff]
        %v440 = vld [vmem:[%s2 + $0x30] sm:$0xff]
        %v441 = vld [vmem:[%s2 + $0x38] sm:$0xff]
        %442 = vmatprep.subr.mxu0 %v435
        %443 = vmatpush1.msra.mxu0 %v434
        %444 = vmatprep.subr.mxu0 %v437
        %445 = vmatpush1.msra.mxu0 %v436
        %446 = vmatprep.subr.mxu0 %v439
        %447 = vmatpush1.msra.mxu0 %v438
        %448 = vmatprep.subr.mxu0 %v441
        %449 = vmatpush1.msra.mxu0 %v440
        %450 = vmatprep.subr.mxu0 0.0
        %451 = vmatpush1.msra.mxu0 0.0
        %452 = vmatprep.subr.mxu0 0.0
        %453 = vmatpush1.msra.mxu0 0.0
        %454 = vmatprep.subr.mxu0 0.0
        %455 = vmatpush1.msra.mxu0 0.0
        %456 = vmatprep.subr.mxu0 0.0
        %457 = vmatpush1.msra.mxu0 0.0
        %458 = vmatprep.subr.mxu0 0.0
        %459 = vmatpush1.msra.mxu0 0.0
        %460 = vmatprep.subr.mxu0 0.0
        %461 = vmatpush1.msra.mxu0 0.0
        %462 = vmatprep.subr.mxu0 0.0
        %463 = vmatpush1.msra.mxu0 0.0
        %464 = vmatprep.subr.mxu0 0.0
        %465 = vmatpush1.msra.mxu0 0.0
        %466 = vmatprep.subr.mxu0 0.0
        %467 = vmatpush1.msra.mxu0 0.0
        %468 = vmatprep.subr.mxu0 0.0
        %469 = vmatpush1.msra.mxu0 0.0
        %470 = vmatprep.subr.mxu0 0.0
        %471 = vmatpush1.msra.mxu0 0.0
        %472 = vmatprep.subr.mxu0 0.0
        %473 = vmatpush1.msra.mxu0 0.0
        %474 = vmatprep.subr.mxu0 0.0
        %475 = vmatpush1.msra.mxu0 0.0
        %476 = vmatprep.subr.mxu0 0.0
        %477 = vmatpush1.msra.mxu0 0.0
        %478 = vmatprep.subr.mxu0 0.0
        %479 = vmatpush1.msra.mxu0 0.0
        %480 = vmatprep.subr.mxu0 0.0
        %481 = vmatpush1.msra.mxu0 0.0
        %482 = vmatprep.subr.mxu0 0.0
        %483 = vmatpush1.msra.mxu0 0.0
        %484 = vmatprep.subr.mxu0 0.0
        %485 = vmatpush1.msra.mxu0 0.0
        %486 = vmatprep.subr.mxu0 0.0
        %487 = vmatpush1.msra.mxu0 0.0
        %488 = vmatprep.subr.mxu0 0.0
        %489 = vmatpush1.msra.mxu0 0.0
        %490 = vmatprep.subr.mxu0 0.0
        %491 = vmatpush1.msra.mxu0 0.0
        %492 = vmatprep.subr.mxu0 0.0
        %493 = vmatpush1.msra.mxu0 0.0
        %494 = vmatprep.subr.mxu0 0.0
        %495 = vmatpush1.msra.mxu0 0.0
        %496 = vmatprep.subr.mxu0 0.0
        %497 = vmatpush1.msra.mxu0 0.0
        %498 = vmatprep.subr.mxu0 0.0
        %499 = vmatpush1.msra.mxu0 0.0
        %500 = vmatprep.subr.mxu0 0.0
        %501 = vmatpush1.msra.mxu0 0.0
        %502 = vmatprep.subr.mxu0 0.0
        %503 = vmatpush1.msra.mxu0 0.0
        %504 = vmatprep.subr.mxu0 0.0
        %505 = vmatpush1.msra.mxu0 0.0
        %506 = vmatprep.mubr.f32.mxu0 0.0
        %507 = vmatmul.mubr.f32.gmra.mrb[0].mxu0 %v287
        %v508 = vpop.f32.mrb[0].mxu0
        %v509 = vadd.f32 0.0, %v508
        %v510 = vpop.f32.mrb[0].mxu0
        %v511 = vadd.f32 0.0, %v510
        %512 = vdwg.mxu0
        %514 = vrot.lane.b32.xlu0 %v509, 64
        %v515 = vpop.permute.xlu0 %514
        %vm517 = vcmask 64512
        %v519 = vsel %vm517, %v396, 0
        %v522 = vsel %vm517, %v401, 0
        %v525 = vsel %vm517, %v406, 0
        %v528 = vsel %vm517, %v411, 0
        %v531 = vsel %vm517, %v416, 0
        %v534 = vsel %vm517, %v421, 0
        %v537 = vsel %vm517, %v426, 0
        %v540 = vsel %vm517, %v431, 0
        %542 = vmatprep.subr.mxu0 0.0
        %543 = vmatpush1.msra.mxu0 %v515
        %544 = vmatprep.subr.mxu0 0.0
        %545 = vmatpush1.msra.mxu0 0.0
        %546 = vmatprep.subr.mxu0 0.0
        %547 = vmatpush1.msra.mxu0 0.0
        %548 = vmatprep.subr.mxu0 0.0
        %549 = vmatpush1.msra.mxu0 0.0
        %550 = vmatprep.subr.mxu0 0.0
        %551 = vmatpush1.msra.mxu0 0.0
        %552 = vmatprep.subr.mxu0 0.0
        %553 = vmatpush1.msra.mxu0 0.0
        %554 = vmatprep.subr.mxu0 0.0
        %555 = vmatpush1.msra.mxu0 0.0
        %556 = vmatprep.subr.mxu0 0.0
        %557 = vmatpush1.msra.mxu0 0.0
        %558 = vmatprep.subr.mxu0 0.0
        %559 = vmatpush1.msra.mxu0 0.0
        %560 = vmatprep.subr.mxu0 0.0
        %561 = vmatpush1.msra.mxu0 0.0
        %562 = vmatprep.subr.mxu0 0.0
        %563 = vmatpush1.msra.mxu0 0.0
        %564 = vmatprep.subr.mxu0 0.0
        %565 = vmatpush1.msra.mxu0 0.0
        %566 = vmatprep.subr.mxu0 0.0
        %567 = vmatpush1.msra.mxu0 0.0
        %568 = vmatprep.subr.mxu0 0.0
        %569 = vmatpush1.msra.mxu0 0.0
        %570 = vmatprep.subr.mxu0 0.0
        %571 = vmatpush1.msra.mxu0 0.0
        %572 = vmatprep.subr.mxu0 0.0
        %573 = vmatpush1.msra.mxu0 0.0
        %574 = vmatprep.subr.mxu0 0.0
        %575 = vmatpush1.msra.mxu0 0.0
        %576 = vmatprep.subr.mxu0 0.0
        %577 = vmatpush1.msra.mxu0 0.0
        %578 = vmatprep.subr.mxu0 0.0
        %579 = vmatpush1.msra.mxu0 0.0
        %580 = vmatprep.subr.mxu0 0.0
        %581 = vmatpush1.msra.mxu0 0.0
        %582 = vmatprep.subr.mxu0 0.0
        %583 = vmatpush1.msra.mxu0 0.0
        %584 = vmatprep.subr.mxu0 0.0
        %585 = vmatpush1.msra.mxu0 0.0
        %586 = vmatprep.subr.mxu0 0.0
        %587 = vmatpush1.msra.mxu0 0.0
        %588 = vmatprep.subr.mxu0 0.0
        %589 = vmatpush1.msra.mxu0 0.0
        %590 = vmatprep.subr.mxu0 0.0
        %591 = vmatpush1.msra.mxu0 0.0
        %592 = vmatprep.subr.mxu0 0.0
        %593 = vmatpush1.msra.mxu0 0.0
        %594 = vmatprep.subr.mxu0 0.0
        %595 = vmatpush1.msra.mxu0 0.0
        %596 = vmatprep.subr.mxu0 0.0
        %597 = vmatpush1.msra.mxu0 0.0
        %598 = vmatprep.subr.mxu0 0.0
        %599 = vmatpush1.msra.mxu0 0.0
        %600 = vmatprep.subr.mxu0 0.0
        %601 = vmatpush1.msra.mxu0 0.0
        %602 = vmatprep.subr.mxu0 0.0
        %603 = vmatpush1.msra.mxu0 0.0
        %604 = vmatprep.subr.mxu0 0.0
        %605 = vmatpush1.msra.mxu0 0.0
        %606 = vmatprep.mubr.f32.mxu0 0.0
        %607 = vmatmul.mubr.f32.gmra.mrb[0].mxu0 %v519
        %v608 = vpop.f32.mrb[0].mxu0
        %v609 = vadd.f32 0.0, %v608
        %v610 = vpop.f32.mrb[0].mxu0
        %611 = vmatprep.mubr.f32.mxu0 0.0
        %612 = vmatmul.mubr.f32.gmra.mrb[0].mxu0 %v522
        %v613 = vpop.f32.mrb[0].mxu0
        %v614 = vadd.f32 0.0, %v613
        %v615 = vpop.f32.mrb[0].mxu0
        %616 = vmatprep.mubr.f32.mxu0 0.0
        %617 = vmatmul.mubr.f32.gmra.mrb[0].mxu0 %v525
        %v618 = vpop.f32.mrb[0].mxu0
        %v619 = vadd.f32 0.0, %v618
        %v620 = vpop.f32.mrb[0].mxu0
        %621 = vmatprep.mubr.f32.mxu0 0.0
        %622 = vmatmul.mubr.f32.gmra.mrb[0].mxu0 %v528
        %v623 = vpop.f32.mrb[0].mxu0
        %v624 = vadd.f32 0.0, %v623
        %v625 = vpop.f32.mrb[0].mxu0
        %626 = vmatprep.mubr.f32.mxu0 0.0
        %627 = vmatmul.mubr.f32.gmra.mrb[0].mxu0 %v531
        %v628 = vpop.f32.mrb[0].mxu0
        %v629 = vadd.f32 0.0, %v628
        %v630 = vpop.f32.mrb[0].mxu0
        %631 = vmatprep.mubr.f32.mxu0 0.0
        %632 = vmatmul.mubr.f32.gmra.mrb[0].mxu0 %v534
        %v633 = vpop.f32.mrb[0].mxu0
        %v634 = vadd.f32 0.0, %v633
        %v635 = vpop.f32.mrb[0].mxu0
        %636 = vmatprep.mubr.f32.mxu0 0.0
        %637 = vmatmul.mubr.f32.gmra.mrb[0].mxu0 %v537
        %v638 = vpop.f32.mrb[0].mxu0
        %v639 = vadd.f32 0.0, %v638
        %v640 = vpop.f32.mrb[0].mxu0
        %641 = vmatprep.mubr.f32.mxu0 0.0
        %642 = vmatmul.mubr.f32.gmra.mrb[0].mxu0 %v540
        %v643 = vpop.f32.mrb[0].mxu0
        %v644 = vadd.f32 0.0, %v643
        %v645 = vpop.f32.mrb[0].mxu0
        %646 = vdwg.mxu0
        %v648 = vsel %vm517, %v356, 0
        %v651 = vsel %vm517, %v361, 0
        %v654 = vsel %vm517, %v366, 0
        %v657 = vsel %vm517, %v371, 0
        %v660 = vsel %vm517, %v376, 0
        %v663 = vsel %vm517, %v381, 0
        %v666 = vsel %vm517, %v386, 0
        %v669 = vsel %vm517, %v391, 0
        %671 = vmatprep.subr.mxu0 0.0
        %672 = vmatpush1.msra.mxu0 %v509
        %673 = vmatprep.subr.mxu0 0.0
        %674 = vmatpush1.msra.mxu0 0.0
        %675 = vmatprep.subr.mxu0 0.0
        %676 = vmatpush1.msra.mxu0 0.0
        %677 = vmatprep.subr.mxu0 0.0
        %678 = vmatpush1.msra.mxu0 0.0
        %679 = vmatprep.subr.mxu0 0.0
        %680 = vmatpush1.msra.mxu0 0.0
        %681 = vmatprep.subr.mxu0 0.0
        %682 = vmatpush1.msra.mxu0 0.0
        %683 = vmatprep.subr.mxu0 0.0
        %684 = vmatpush1.msra.mxu0 0.0
        %685 = vmatprep.subr.mxu0 0.0
        %686 = vmatpush1.msra.mxu0 0.0
        %687 = vmatprep.subr.mxu0 0.0
        %688 = vmatpush1.msra.mxu0 0.0
        %689 = vmatprep.subr.mxu0 0.0
        %690 = vmatpush1.msra.mxu0 0.0
        %691 = vmatprep.subr.mxu0 0.0
        %692 = vmatpush1.msra.mxu0 0.0
        %693 = vmatprep.subr.mxu0 0.0
        %694 = vmatpush1.msra.mxu0 0.0
        %695 = vmatprep.subr.mxu0 0.0
        %696 = vmatpush1.msra.mxu0 0.0
        %697 = vmatprep.subr.mxu0 0.0
        %698 = vmatpush1.msra.mxu0 0.0
        %699 = vmatprep.subr.mxu0 0.0
        %700 = vmatpush1.msra.mxu0 0.0
        %701 = vmatprep.subr.mxu0 0.0
        %702 = vmatpush1.msra.mxu0 0.0
        %703 = vmatprep.subr.mxu0 0.0
        %704 = vmatpush1.msra.mxu0 0.0
        %705 = vmatprep.subr.mxu0 0.0
        %706 = vmatpush1.msra.mxu0 0.0
        %707 = vmatprep.subr.mxu0 0.0
        %708 = vmatpush1.msra.mxu0 0.0
        %709 = vmatprep.subr.mxu0 0.0
        %710 = vmatpush1.msra.mxu0 0.0
        %711 = vmatprep.subr.mxu0 0.0
        %712 = vmatpush1.msra.mxu0 0.0
        %713 = vmatprep.subr.mxu0 0.0
        %714 = vmatpush1.msra.mxu0 0.0
        %715 = vmatprep.subr.mxu0 0.0
        %716 = vmatpush1.msra.mxu0 0.0
        %717 = vmatprep.subr.mxu0 0.0
        %718 = vmatpush1.msra.mxu0 0.0
        %719 = vmatprep.subr.mxu0 0.0
        %720 = vmatpush1.msra.mxu0 0.0
        %721 = vmatprep.subr.mxu0 0.0
        %722 = vmatpush1.msra.mxu0 0.0
        %723 = vmatprep.subr.mxu0 0.0
        %724 = vmatpush1.msra.mxu0 0.0
        %725 = vmatprep.subr.mxu0 0.0
        %726 = vmatpush1.msra.mxu0 0.0
        %727 = vmatprep.subr.mxu0 0.0
        %728 = vmatpush1.msra.mxu0 0.0
        %729 = vmatprep.subr.mxu0 0.0
        %730 = vmatpush1.msra.mxu0 0.0
        %731 = vmatprep.subr.mxu0 0.0
        %732 = vmatpush1.msra.mxu0 0.0
        %733 = vmatprep.subr.mxu0 0.0
        %734 = vmatpush1.msra.mxu0 0.0
        %735 = vmatprep.mubr.f32.mxu0 0.0
        %736 = vmatmul.mubr.f32.gmra.mrb[0].mxu0 %v648
        %v737 = vpop.f32.mrb[0].mxu0
        %v738 = vadd.f32 %v609, %v737
        %v739 = vpop.f32.mrb[0].mxu0
        %740 = vmatprep.mubr.f32.mxu0 0.0
        %741 = vmatmul.mubr.f32.gmra.mrb[0].mxu0 %v651
        %v742 = vpop.f32.mrb[0].mxu0
        %v743 = vadd.f32 %v614, %v742
        %v744 = vpop.f32.mrb[0].mxu0
        %745 = vmatprep.mubr.f32.mxu0 0.0
        %746 = vmatmul.mubr.f32.gmra.mrb[0].mxu0 %v654
        %v747 = vpop.f32.mrb[0].mxu0
        %v748 = vadd.f32 %v619, %v747
        %v749 = vpop.f32.mrb[0].mxu0
        %750 = vmatprep.mubr.f32.mxu0 0.0
        %751 = vmatmul.mubr.f32.gmra.mrb[0].mxu0 %v657
        %v752 = vpop.f32.mrb[0].mxu0
        %v753 = vadd.f32 %v624, %v752
        %v754 = vpop.f32.mrb[0].mxu0
        %755 = vmatprep.mubr.f32.mxu0 0.0
        %756 = vmatmul.mubr.f32.gmra.mrb[0].mxu0 %v660
        %v757 = vpop.f32.mrb[0].mxu0
        %v758 = vadd.f32 %v629, %v757
        %v759 = vpop.f32.mrb[0].mxu0
        %760 = vmatprep.mubr.f32.mxu0 0.0
        %761 = vmatmul.mubr.f32.gmra.mrb[0].mxu0 %v663
        %v762 = vpop.f32.mrb[0].mxu0
        %v763 = vadd.f32 %v634, %v762
        %v764 = vpop.f32.mrb[0].mxu0
        %765 = vmatprep.mubr.f32.mxu0 0.0
        %766 = vmatmul.mubr.f32.gmra.mrb[0].mxu0 %v666
        %v767 = vpop.f32.mrb[0].mxu0
        %v768 = vadd.f32 %v639, %v767
        %v769 = vpop.f32.mrb[0].mxu0
        %770 = vmatprep.mubr.f32.mxu0 0.0
        %771 = vmatmul.mubr.f32.gmra.mrb[0].mxu0 %v669
        %v772 = vpop.f32.mrb[0].mxu0
        %v773 = vadd.f32 %v644, %v772
        %v774 = vpop.f32.mrb[0].mxu0
        %775 = vdwg.mxu0
        %v776 = vmul.f32 %v738, 0.25
        %v777 = vmul.f32 %v743, 0.25
        %v778 = vmul.f32 %v748, 0.25
        %v779 = vmul.f32 %v753, 0.25
        %v780 = vmul.f32 %v758, 0.25
        %v781 = vmul.f32 %v763, 0.25
        %v782 = vmul.f32 %v768, 0.25
        %v783 = vmul.f32 %v773, 0.25
        %v784 = vlaneseq
        %v785 = vshrl.u32 %v784, 7
        %v786 = vadd.s32 %v785, 8
        %v787 = vadd.s32 %v785, 16
        %v788 = vadd.s32 %v785, 24
        %v789 = vadd.s32 %v785, 32
        %v790 = vadd.s32 %v785, 40
        %v791 = vadd.s32 %v785, 48
        %v792 = vadd.s32 %v785, 56
        %v793 = vlaneseq
        %v794 = vand.u32 %v793, 127
        %v795 = vand.u32 %v785, 7
        %v796 = vand.u32 %v786, 7
        %v797 = vand.u32 %v787, 7
        %v798 = vand.u32 %v788, 7
        %v799 = vand.u32 %v789, 7
        %v800 = vand.u32 %v790, 7
        %v801 = vand.u32 %v791, 7
        %v802 = vand.u32 %v792, 7
        %v803 = vand.u32 %v794, 7
        %vm804 = vcmp.eq.s32.totalorder %v795, %v803
        %vm805 = vcmp.eq.s32.totalorder %v796, %v803
        %vm806 = vcmp.eq.s32.totalorder %v797, %v803
        %vm807 = vcmp.eq.s32.totalorder %v798, %v803
        %vm808 = vcmp.eq.s32.totalorder %v799, %v803
        %vm809 = vcmp.eq.s32.totalorder %v800, %v803
        %vm810 = vcmp.eq.s32.totalorder %v801, %v803
        %vm811 = vcmp.eq.s32.totalorder %v802, %v803
        %v812 = vsel %vm804, %v776, -1e+30
        %v813 = vsel %vm805, %v777, -1e+30
        %v814 = vsel %vm806, %v778, -1e+30
        %v815 = vsel %vm807, %v779, -1e+30
        %v816 = vsel %vm808, %v780, -1e+30
        %v817 = vsel %vm809, %v781, -1e+30
        %v818 = vsel %vm810, %v782, -1e+30
        %v819 = vsel %vm811, %v783, -1e+30
        %vm820 = vcmask 523264
        %v821 = vsel %vm820, %v812, -inf
        %822 = vmax.xlane.f32.xlu0 %v821
        %v823 = vpop.xlane.xlu0 %822
        %v824 = vsel %vm820, %v813, -inf
        %825 = vmax.xlane.f32.xlu0 %v824
        %v826 = vpop.xlane.xlu0 %825
        %v827 = vsel %vm820, %v814, -inf
        %828 = vmax.xlane.f32.xlu0 %v827
        %v829 = vpop.xlane.xlu0 %828
        %v830 = vsel %vm820, %v815, -inf
        %831 = vmax.xlane.f32.xlu0 %v830
        %v832 = vpop.xlane.xlu0 %831
        %v833 = vsel %vm820, %v816, -inf
        %834 = vmax.xlane.f32.xlu0 %v833
        %v835 = vpop.xlane.xlu0 %834
        %v836 = vsel %vm820, %v817, -inf
        %837 = vmax.xlane.f32.xlu0 %v836
        %v838 = vpop.xlane.xlu0 %837
        %v839 = vsel %vm820, %v818, -inf
        %840 = vmax.xlane.f32.xlu0 %v839
        %v841 = vpop.xlane.xlu0 %840
        %v842 = vsel %vm820, %v819, -inf
        %843 = vmax.xlane.f32.xlu0 %v842
        %v844 = vpop.xlane.xlu0 %843
        %v845 = vsub.f32 %v812, %v823
        %v846 = vsub.f32 %v813, %v826
        %v847 = vsub.f32 %v814, %v829
        %v848 = vsub.f32 %v815, %v832
        %v849 = vsub.f32 %v816, %v835
        %v850 = vsub.f32 %v817, %v838
        %v851 = vsub.f32 %v818, %v841
        %v852 = vsub.f32 %v819, %v844
        %v853 = vmul.f32 %v845, 1.442695
        %v854 = vpow.pop %v853
        %v855 = vmul.f32 %v846, 1.442695
        %v856 = vpow.pop %v855
        %v857 = vmul.f32 %v847, 1.442695
        %v858 = vpow.pop %v857
        %v859 = vmul.f32 %v848, 1.442695
        %v860 = vpow.pop %v859
        %v861 = vmul.f32 %v849, 1.442695
        %v862 = vpow.pop %v861
        %v863 = vmul.f32 %v850, 1.442695
        %v864 = vpow.pop %v863
        %v865 = vmul.f32 %v851, 1.442695
        %v866 = vpow.pop %v865
        %v867 = vmul.f32 %v852, 1.442695
        %v868 = vpow.pop %v867
        %v869 = vsel %vm820, %v854, 0.0
        %870 = vadd.xlane.f32.xlu0 %v869
        %v871 = vpop.xlane.xlu0 %870
        %v872 = vsel %vm820, %v856, 0.0
        %873 = vadd.xlane.f32.xlu0 %v872
        %v874 = vpop.xlane.xlu0 %873
        %v875 = vsel %vm820, %v858, 0.0
        %876 = vadd.xlane.f32.xlu0 %v875
        %v877 = vpop.xlane.xlu0 %876
        %v878 = vsel %vm820, %v860, 0.0
        %879 = vadd.xlane.f32.xlu0 %v878
        %v880 = vpop.xlane.xlu0 %879
        %v881 = vsel %vm820, %v862, 0.0
        %882 = vadd.xlane.f32.xlu0 %v881
        %v883 = vpop.xlane.xlu0 %882
        %v884 = vsel %vm820, %v864, 0.0
        %885 = vadd.xlane.f32.xlu0 %v884
        %v886 = vpop.xlane.xlu0 %885
        %v887 = vsel %vm820, %v866, 0.0
        %888 = vadd.xlane.f32.xlu0 %v887
        %v889 = vpop.xlane.xlu0 %888
        %v890 = vsel %vm820, %v868, 0.0
        %891 = vadd.xlane.f32.xlu0 %v890
        %v892 = vpop.xlane.xlu0 %891
        %v893 = vrcp.pop %v871
        %v894 = vrcp.pop %v874
        %v895 = vrcp.pop %v877
        %v896 = vrcp.pop %v880
        %v897 = vrcp.pop %v883
        %v898 = vrcp.pop %v886
        %v899 = vrcp.pop %v889
        %v900 = vrcp.pop %v892
        %v901 = vmul.f32 %v854, %v893
        %v902 = vmul.f32 %v856, %v894
        %v903 = vmul.f32 %v858, %v895
        %v904 = vmul.f32 %v860, %v896
        %v905 = vmul.f32 %v862, %v897
        %v906 = vmul.f32 %v864, %v898
        %v907 = vmul.f32 %v866, %v899
        %v908 = vmul.f32 %v868, %v900
        %v910 = vsel %vm820, %v901, 0
        %v913 = vsel %vm820, %v902, 0
        %v916 = vsel %vm820, %v903, 0
        %v919 = vsel %vm820, %v904, 0
        %v922 = vsel %vm820, %v905, 0
        %v925 = vsel %vm820, %v906, 0
        %v928 = vsel %vm820, %v907, 0
        %v931 = vsel %vm820, %v908, 0
        %v934 = vsel %vm820, %v511, 0
        %936 = vmatprep.subr.mxu0 0.0
        %937 = vmatpush1.xpose.msra.mxu0 %v934
        %938 = vmatprep.subr.mxu0 0.0
        %939 = vmatpush1.xpose.msra.mxu0 0.0
        %940 = vmatprep.subr.mxu0 0.0
        %941 = vmatpush1.xpose.msra.mxu0 0.0
        %942 = vmatprep.subr.mxu0 0.0
        %943 = vmatpush1.xpose.msra.mxu0 0.0
        %944 = vmatprep.subr.mxu0 0.0
        %945 = vmatpush1.xpose.msra.mxu0 0.0
        %946 = vmatprep.subr.mxu0 0.0
        %947 = vmatpush1.xpose.msra.mxu0 0.0
        %948 = vmatprep.subr.mxu0 0.0
        %949 = vmatpush1.xpose.msra.mxu0 0.0
        %950 = vmatprep.subr.mxu0 0.0
        %951 = vmatpush1.xpose.msra.mxu0 0.0
        %952 = vmatprep.subr.mxu0 0.0
        %953 = vmatpush1.xpose.msra.mxu0 0.0
        %954 = vmatprep.subr.mxu0 0.0
        %955 = vmatpush1.xpose.msra.mxu0 0.0
        %956 = vmatprep.subr.mxu0 0.0
        %957 = vmatpush1.xpose.msra.mxu0 0.0
        %958 = vmatprep.subr.mxu0 0.0
        %959 = vmatpush1.xpose.msra.mxu0 0.0
        %960 = vmatprep.subr.mxu0 0.0
        %961 = vmatpush1.xpose.msra.mxu0 0.0
        %962 = vmatprep.subr.mxu0 0.0
        %963 = vmatpush1.xpose.msra.mxu0 0.0
        %964 = vmatprep.subr.mxu0 0.0
        %965 = vmatpush1.xpose.msra.mxu0 0.0
        %966 = vmatprep.subr.mxu0 0.0
        %967 = vmatpush1.xpose.msra.mxu0 0.0
        %968 = vmatprep.subr.mxu0 0.0
        %969 = vmatpush1.xpose.msra.mxu0 0.0
        %970 = vmatprep.subr.mxu0 0.0
        %971 = vmatpush1.xpose.msra.mxu0 0.0
        %972 = vmatprep.subr.mxu0 0.0
        %973 = vmatpush1.xpose.msra.mxu0 0.0
        %974 = vmatprep.subr.mxu0 0.0
        %975 = vmatpush1.xpose.msra.mxu0 0.0
        %976 = vmatprep.subr.mxu0 0.0
        %977 = vmatpush1.xpose.msra.mxu0 0.0
        %978 = vmatprep.subr.mxu0 0.0
        %979 = vmatpush1.xpose.msra.mxu0 0.0
        %980 = vmatprep.subr.mxu0 0.0
        %981 = vmatpush1.xpose.msra.mxu0 0.0
        %982 = vmatprep.subr.mxu0 0.0
        %983 = vmatpush1.xpose.msra.mxu0 0.0
        %984 = vmatprep.subr.mxu0 0.0
        %985 = vmatpush1.xpose.msra.mxu0 0.0
        %986 = vmatprep.subr.mxu0 0.0
        %987 = vmatpush1.xpose.msra.mxu0 0.0
        %988 = vmatprep.subr.mxu0 0.0
        %989 = vmatpush1.xpose.msra.mxu0 0.0
        %990 = vmatprep.subr.mxu0 0.0
        %991 = vmatpush1.xpose.msra.mxu0 0.0
        %992 = vmatprep.subr.mxu0 0.0
        %993 = vmatpush1.xpose.msra.mxu0 0.0
        %994 = vmatprep.subr.mxu0 0.0
        %995 = vmatpush1.xpose.msra.mxu0 0.0
        %996 = vmatprep.subr.mxu0 0.0
        %997 = vmatpush1.xpose.msra.mxu0 0.0
        %998 = vmatprep.subr.mxu0 0.0
        %999 = vmatpush1.xpose.msra.mxu0 0.0
        %1000 = vmatprep.mubr.f32.mxu0 0.0
        %1001 = vmatmul.mubr.f32.gmra.mrb[0].mxu0 %v910
        %v1002 = vpop.f32.mrb[0].mxu0
        %v1003 = vadd.f32 0.0, %v1002
        %v1004 = vpop.f32.mrb[0].mxu0
        %1005 = vmatprep.mubr.f32.mxu0 0.0
        %1006 = vmatmul.mubr.f32.gmra.mrb[0].mxu0 %v913
        %v1007 = vpop.f32.mrb[0].mxu0
        %v1008 = vadd.f32 0.0, %v1007
        %v1009 = vpop.f32.mrb[0].mxu0
        %1010 = vmatprep.mubr.f32.mxu0 0.0
        %1011 = vmatmul.mubr.f32.gmra.mrb[0].mxu0 %v916
        %v1012 = vpop.f32.mrb[0].mxu0
        %v1013 = vadd.f32 0.0, %v1012
        %v1014 = vpop.f32.mrb[0].mxu0
        %1015 = vmatprep.mubr.f32.mxu0 0.0
        %1016 = vmatmul.mubr.f32.gmra.mrb[0].mxu0 %v919
        %v1017 = vpop.f32.mrb[0].mxu0
        %v1018 = vadd.f32 0.0, %v1017
        %v1019 = vpop.f32.mrb[0].mxu0
        %1020 = vmatprep.mubr.f32.mxu0 0.0
        %1021 = vmatmul.mubr.f32.gmra.mrb[0].mxu0 %v922
        %v1022 = vpop.f32.mrb[0].mxu0
        %v1023 = vadd.f32 0.0, %v1022
        %v1024 = vpop.f32.mrb[0].mxu0
        %1025 = vmatprep.mubr.f32.mxu0 0.0
        %1026 = vmatmul.mubr.f32.gmra.mrb[0].mxu0 %v925
        %v1027 = vpop.f32.mrb[0].mxu0
        %v1028 = vadd.f32 0.0, %v1027
        %v1029 = vpop.f32.mrb[0].mxu0
        %1030 = vmatprep.mubr.f32.mxu0 0.0
        %1031 = vmatmul.mubr.f32.gmra.mrb[0].mxu0 %v928
        %v1032 = vpop.f32.mrb[0].mxu0
        %v1033 = vadd.f32 0.0, %v1032
        %v1034 = vpop.f32.mrb[0].mxu0
        %1035 = vmatprep.mubr.f32.mxu0 0.0
        %1036 = vmatmul.mubr.f32.gmra.mrb[0].mxu0 %v931
        %v1037 = vpop.f32.mrb[0].mxu0
        %v1038 = vadd.f32 0.0, %v1037
        %v1039 = vpop.f32.mrb[0].mxu0
        %1040 = vdwg.mxu0
        %1041 = vrot.lane.b32.xlu0 %v511, 64
        %v1042 = vpop.permute.xlu0 %1041
        %v1043 = vsel %vm820, %v1042, 0
        %1045 = vmatprep.subr.mxu0 0.0
        %1046 = vmatpush1.xpose.msra.mxu0 %v1043
        %1047 = vmatprep.subr.mxu0 0.0
        %1048 = vmatpush1.xpose.msra.mxu0 0.0
        %1049 = vmatprep.subr.mxu0 0.0
        %1050 = vmatpush1.xpose.msra.mxu0 0.0
        %1051 = vmatprep.subr.mxu0 0.0
        %1052 = vmatpush1.xpose.msra.mxu0 0.0
        %1053 = vmatprep.subr.mxu0 0.0
        %1054 = vmatpush1.xpose.msra.mxu0 0.0
        %1055 = vmatprep.subr.mxu0 0.0
        %1056 = vmatpush1.xpose.msra.mxu0 0.0
        %1057 = vmatprep.subr.mxu0 0.0
        %1058 = vmatpush1.xpose.msra.mxu0 0.0
        %1059 = vmatprep.subr.mxu0 0.0
        %1060 = vmatpush1.xpose.msra.mxu0 0.0
        %1061 = vmatprep.subr.mxu0 0.0
        %1062 = vmatpush1.xpose.msra.mxu0 0.0
        %1063 = vmatprep.subr.mxu0 0.0
        %1064 = vmatpush1.xpose.msra.mxu0 0.0
        %1065 = vmatprep.subr.mxu0 0.0
        %1066 = vmatpush1.xpose.msra.mxu0 0.0
        %1067 = vmatprep.subr.mxu0 0.0
        %1068 = vmatpush1.xpose.msra.mxu0 0.0
        %1069 = vmatprep.subr.mxu0 0.0
        %1070 = vmatpush1.xpose.msra.mxu0 0.0
        %1071 = vmatprep.subr.mxu0 0.0
        %1072 = vmatpush1.xpose.msra.mxu0 0.0
        %1073 = vmatprep.subr.mxu0 0.0
        %1074 = vmatpush1.xpose.msra.mxu0 0.0
        %1075 = vmatprep.subr.mxu0 0.0
        %1076 = vmatpush1.xpose.msra.mxu0 0.0
        %1077 = vmatprep.subr.mxu0 0.0
        %1078 = vmatpush1.xpose.msra.mxu0 0.0
        %1079 = vmatprep.subr.mxu0 0.0
        %1080 = vmatpush1.xpose.msra.mxu0 0.0
        %1081 = vmatprep.subr.mxu0 0.0
        %1082 = vmatpush1.xpose.msra.mxu0 0.0
        %1083 = vmatprep.subr.mxu0 0.0
        %1084 = vmatpush1.xpose.msra.mxu0 0.0
        %1085 = vmatprep.subr.mxu0 0.0
        %1086 = vmatpush1.xpose.msra.mxu0 0.0
        %1087 = vmatprep.subr.mxu0 0.0
        %1088 = vmatpush1.xpose.msra.mxu0 0.0
        %1089 = vmatprep.subr.mxu0 0.0
        %1090 = vmatpush1.xpose.msra.mxu0 0.0
        %1091 = vmatprep.subr.mxu0 0.0
        %1092 = vmatpush1.xpose.msra.mxu0 0.0
        %1093 = vmatprep.subr.mxu0 0.0
        %1094 = vmatpush1.xpose.msra.mxu0 0.0
        %1095 = vmatprep.subr.mxu0 0.0
        %1096 = vmatpush1.xpose.msra.mxu0 0.0
        %1097 = vmatprep.subr.mxu0 0.0
        %1098 = vmatpush1.xpose.msra.mxu0 0.0
        %1099 = vmatprep.subr.mxu0 0.0
        %1100 = vmatpush1.xpose.msra.mxu0 0.0
        %1101 = vmatprep.subr.mxu0 0.0
        %1102 = vmatpush1.xpose.msra.mxu0 0.0
        %1103 = vmatprep.subr.mxu0 0.0
        %1104 = vmatpush1.xpose.msra.mxu0 0.0
        %1105 = vmatprep.subr.mxu0 0.0
        %1106 = vmatpush1.xpose.msra.mxu0 0.0
        %1107 = vmatprep.subr.mxu0 0.0
        %1108 = vmatpush1.xpose.msra.mxu0 0.0
        %1109 = vmatprep.mubr.f32.mxu0 0.0
        %1110 = vmatmul.mubr.f32.gmra.mrb[0].mxu0 %v910
        %v1111 = vpop.f32.mrb[0].mxu0
        %v1112 = vadd.f32 0.0, %v1111
        %v1113 = vpop.f32.mrb[0].mxu0
        %1114 = vmatprep.mubr.f32.mxu0 0.0
        %1115 = vmatmul.mubr.f32.gmra.mrb[0].mxu0 %v913
        %v1116 = vpop.f32.mrb[0].mxu0
        %v1117 = vadd.f32 0.0, %v1116
        %v1118 = vpop.f32.mrb[0].mxu0
        %1119 = vmatprep.mubr.f32.mxu0 0.0
        %1120 = vmatmul.mubr.f32.gmra.mrb[0].mxu0 %v916
        %v1121 = vpop.f32.mrb[0].mxu0
        %v1122 = vadd.f32 0.0, %v1121
        %v1123 = vpop.f32.mrb[0].mxu0
        %1124 = vmatprep.mubr.f32.mxu0 0.0
        %1125 = vmatmul.mubr.f32.gmra.mrb[0].mxu0 %v919
        %v1126 = vpop.f32.mrb[0].mxu0
        %v1127 = vadd.f32 0.0, %v1126
        %v1128 = vpop.f32.mrb[0].mxu0
        %1129 = vmatprep.mubr.f32.mxu0 0.0
        %1130 = vmatmul.mubr.f32.gmra.mrb[0].mxu0 %v922
        %v1131 = vpop.f32.mrb[0].mxu0
        %v1132 = vadd.f32 0.0, %v1131
        %v1133 = vpop.f32.mrb[0].mxu0
        %1134 = vmatprep.mubr.f32.mxu0 0.0
        %1135 = vmatmul.mubr.f32.gmra.mrb[0].mxu0 %v925
        %v1136 = vpop.f32.mrb[0].mxu0
        %v1137 = vadd.f32 0.0, %v1136
        %v1138 = vpop.f32.mrb[0].mxu0
        %1139 = vmatprep.mubr.f32.mxu0 0.0
        %1140 = vmatmul.mubr.f32.gmra.mrb[0].mxu0 %v928
        %v1141 = vpop.f32.mrb[0].mxu0
        %v1142 = vadd.f32 0.0, %v1141
        %v1143 = vpop.f32.mrb[0].mxu0
        %1144 = vmatprep.mubr.f32.mxu0 0.0
        %1145 = vmatmul.mubr.f32.gmra.mrb[0].mxu0 %v931
        %v1146 = vpop.f32.mrb[0].mxu0
        %v1147 = vadd.f32 0.0, %v1146
        %v1148 = vpop.f32.mrb[0].mxu0
        %1149 = vdwg.mxu0
        %v1150 = vld [vmem:[%s3] sm:$0xff]
        %s1151 = scalar_lea.vmem %s3, 8
        %v1152 = vld [vmem:[%s1151] sm:$0xff]
        %v1154 = vsel %vm517, %v1112, 0
        %1156 = vmatprep.subr.mxu0 0.0
        %1157 = vmatpush1.msra.mxu0 %v1152
        %1158 = vmatprep.subr.mxu0 0.0
        %1159 = vmatpush1.msra.mxu0 0.0
        %1160 = vmatprep.subr.mxu0 0.0
        %1161 = vmatpush1.msra.mxu0 0.0
        %1162 = vmatprep.subr.mxu0 0.0
        %1163 = vmatpush1.msra.mxu0 0.0
        %1164 = vmatprep.subr.mxu0 0.0
        %1165 = vmatpush1.msra.mxu0 0.0
        %1166 = vmatprep.subr.mxu0 0.0
        %1167 = vmatpush1.msra.mxu0 0.0
        %1168 = vmatprep.subr.mxu0 0.0
        %1169 = vmatpush1.msra.mxu0 0.0
        %1170 = vmatprep.subr.mxu0 0.0
        %1171 = vmatpush1.msra.mxu0 0.0
        %1172 = vmatprep.subr.mxu0 0.0
        %1173 = vmatpush1.msra.mxu0 0.0
        %1174 = vmatprep.subr.mxu0 0.0
        %1175 = vmatpush1.msra.mxu0 0.0
        %1176 = vmatprep.subr.mxu0 0.0
        %1177 = vmatpush1.msra.mxu0 0.0
        %1178 = vmatprep.subr.mxu0 0.0
        %1179 = vmatpush1.msra.mxu0 0.0
        %1180 = vmatprep.subr.mxu0 0.0
        %1181 = vmatpush1.msra.mxu0 0.0
        %1182 = vmatprep.subr.mxu0 0.0
        %1183 = vmatpush1.msra.mxu0 0.0
        %1184 = vmatprep.subr.mxu0 0.0
        %1185 = vmatpush1.msra.mxu0 0.0
        %1186 = vmatprep.subr.mxu0 0.0
        %1187 = vmatpush1.msra.mxu0 0.0
        %1188 = vmatprep.subr.mxu0 0.0
        %1189 = vmatpush1.msra.mxu0 0.0
        %1190 = vmatprep.subr.mxu0 0.0
        %1191 = vmatpush1.msra.mxu0 0.0
        %1192 = vmatprep.subr.mxu0 0.0
        %1193 = vmatpush1.msra.mxu0 0.0
        %1194 = vmatprep.subr.mxu0 0.0
        %1195 = vmatpush1.msra.mxu0 0.0
        %1196 = vmatprep.subr.mxu0 0.0
        %1197 = vmatpush1.msra.mxu0 0.0
        %1198 = vmatprep.subr.mxu0 0.0
        %1199 = vmatpush1.msra.mxu0 0.0
        %1200 = vmatprep.subr.mxu0 0.0
        %1201 = vmatpush1.msra.mxu0 0.0
        %1202 = vmatprep.subr.mxu0 0.0
        %1203 = vmatpush1.msra.mxu0 0.0
        %1204 = vmatprep.subr.mxu0 0.0
        %1205 = vmatpush1.msra.mxu0 0.0
        %1206 = vmatprep.subr.mxu0 0.0
        %1207 = vmatpush1.msra.mxu0 0.0
        %1208 = vmatprep.subr.mxu0 0.0
        %1209 = vmatpush1.msra.mxu0 0.0
        %1210 = vmatprep.subr.mxu0 0.0
        %1211 = vmatpush1.msra.mxu0 0.0
        %1212 = vmatprep.subr.mxu0 0.0
        %1213 = vmatpush1.msra.mxu0 0.0
        %1214 = vmatprep.subr.mxu0 0.0
        %1215 = vmatpush1.msra.mxu0 0.0
        %1216 = vmatprep.subr.mxu0 0.0
        %1217 = vmatpush1.msra.mxu0 0.0
        %1218 = vmatprep.subr.mxu0 0.0
        %1219 = vmatpush1.msra.mxu0 0.0
        %1220 = vmatprep.mubr.f32.mxu0 0.0
        %1221 = vmatmul.mubr.f32.gmra.mrb[0].mxu0 %v1154
        %v1222 = vpop.f32.mrb[0].mxu0
        %v1223 = vadd.f32 0.0, %v1222
        %v1224 = vpop.f32.mrb[0].mxu0
        %1225 = vdwg.mxu0
        %v1227 = vsel %vm517, %v1003, 0
        %1229 = vmatprep.subr.mxu0 0.0
        %1230 = vmatpush1.msra.mxu0 %v1150
        %1231 = vmatprep.subr.mxu0 0.0
        %1232 = vmatpush1.msra.mxu0 0.0
        %1233 = vmatprep.subr.mxu0 0.0
        %1234 = vmatpush1.msra.mxu0 0.0
        %1235 = vmatprep.subr.mxu0 0.0
        %1236 = vmatpush1.msra.mxu0 0.0
        %1237 = vmatprep.subr.mxu0 0.0
        %1238 = vmatpush1.msra.mxu0 0.0
        %1239 = vmatprep.subr.mxu0 0.0
        %1240 = vmatpush1.msra.mxu0 0.0
        %1241 = vmatprep.subr.mxu0 0.0
        %1242 = vmatpush1.msra.mxu0 0.0
        %1243 = vmatprep.subr.mxu0 0.0
        %1244 = vmatpush1.msra.mxu0 0.0
        %1245 = vmatprep.subr.mxu0 0.0
        %1246 = vmatpush1.msra.mxu0 0.0
        %1247 = vmatprep.subr.mxu0 0.0
        %1248 = vmatpush1.msra.mxu0 0.0
        %1249 = vmatprep.subr.mxu0 0.0
        %1250 = vmatpush1.msra.mxu0 0.0
        %1251 = vmatprep.subr.mxu0 0.0
        %1252 = vmatpush1.msra.mxu0 0.0
        %1253 = vmatprep.subr.mxu0 0.0
        %1254 = vmatpush1.msra.mxu0 0.0
        %1255 = vmatprep.subr.mxu0 0.0
        %1256 = vmatpush1.msra.mxu0 0.0
        %1257 = vmatprep.subr.mxu0 0.0
        %1258 = vmatpush1.msra.mxu0 0.0
        %1259 = vmatprep.subr.mxu0 0.0
        %1260 = vmatpush1.msra.mxu0 0.0
        %1261 = vmatprep.subr.mxu0 0.0
        %1262 = vmatpush1.msra.mxu0 0.0
        %1263 = vmatprep.subr.mxu0 0.0
        %1264 = vmatpush1.msra.mxu0 0.0
        %1265 = vmatprep.subr.mxu0 0.0
        %1266 = vmatpush1.msra.mxu0 0.0
        %1267 = vmatprep.subr.mxu0 0.0
        %1268 = vmatpush1.msra.mxu0 0.0
        %1269 = vmatprep.subr.mxu0 0.0
        %1270 = vmatpush1.msra.mxu0 0.0
        %1271 = vmatprep.subr.mxu0 0.0
        %1272 = vmatpush1.msra.mxu0 0.0
        %1273 = vmatprep.subr.mxu0 0.0
        %1274 = vmatpush1.msra.mxu0 0.0
        %1275 = vmatprep.subr.mxu0 0.0
        %1276 = vmatpush1.msra.mxu0 0.0
        %1277 = vmatprep.subr.mxu0 0.0
        %1278 = vmatpush1.msra.mxu0 0.0
        %1279 = vmatprep.subr.mxu0 0.0
        %1280 = vmatpush1.msra.mxu0 0.0
        %1281 = vmatprep.subr.mxu0 0.0
        %1282 = vmatpush1.msra.mxu0 0.0
        %1283 = vmatprep.subr.mxu0 0.0
        %1284 = vmatpush1.msra.mxu0 0.0
        %1285 = vmatprep.subr.mxu0 0.0
        %1286 = vmatpush1.msra.mxu0 0.0
        %1287 = vmatprep.subr.mxu0 0.0
        %1288 = vmatpush1.msra.mxu0 0.0
        %1289 = vmatprep.subr.mxu0 0.0
        %1290 = vmatpush1.msra.mxu0 0.0
        %1291 = vmatprep.subr.mxu0 0.0
        %1292 = vmatpush1.msra.mxu0 0.0
        %1293 = vmatprep.mubr.f32.mxu0 0.0
        %1294 = vmatmul.mubr.f32.gmra.mrb[0].mxu0 %v1227
        %v1295 = vpop.f32.mrb[0].mxu0
        %v1296 = vadd.f32 %v1223, %v1295
        %v1297 = vpop.f32.mrb[0].mxu0
        %1298 = vdwg.mxu0
        %s1299 = scalar_lea.vmem %s3, 16
        %v1300 = vld [vmem:[%s1299] sm:$0xff]
        %v1302 = vsel %vm517, %v1008, 0
        %1304 = vmatprep.subr.mxu0 0.0
        %1305 = vmatpush1.msra.mxu0 %v1300
        %1306 = vmatprep.subr.mxu0 0.0
        %1307 = vmatpush1.msra.mxu0 0.0
        %1308 = vmatprep.subr.mxu0 0.0
        %1309 = vmatpush1.msra.mxu0 0.0
        %1310 = vmatprep.subr.mxu0 0.0
        %1311 = vmatpush1.msra.mxu0 0.0
        %1312 = vmatprep.subr.mxu0 0.0
        %1313 = vmatpush1.msra.mxu0 0.0
        %1314 = vmatprep.subr.mxu0 0.0
        %1315 = vmatpush1.msra.mxu0 0.0
        %1316 = vmatprep.subr.mxu0 0.0
        %1317 = vmatpush1.msra.mxu0 0.0
        %1318 = vmatprep.subr.mxu0 0.0
        %1319 = vmatpush1.msra.mxu0 0.0
        %1320 = vmatprep.subr.mxu0 0.0
        %1321 = vmatpush1.msra.mxu0 0.0
        %1322 = vmatprep.subr.mxu0 0.0
        %1323 = vmatpush1.msra.mxu0 0.0
        %1324 = vmatprep.subr.mxu0 0.0
        %1325 = vmatpush1.msra.mxu0 0.0
        %1326 = vmatprep.subr.mxu0 0.0
        %1327 = vmatpush1.msra.mxu0 0.0
        %1328 = vmatprep.subr.mxu0 0.0
        %1329 = vmatpush1.msra.mxu0 0.0
        %1330 = vmatprep.subr.mxu0 0.0
        %1331 = vmatpush1.msra.mxu0 0.0
        %1332 = vmatprep.subr.mxu0 0.0
        %1333 = vmatpush1.msra.mxu0 0.0
        %1334 = vmatprep.subr.mxu0 0.0
        %1335 = vmatpush1.msra.mxu0 0.0
        %1336 = vmatprep.subr.mxu0 0.0
        %1337 = vmatpush1.msra.mxu0 0.0
        %1338 = vmatprep.subr.mxu0 0.0
        %1339 = vmatpush1.msra.mxu0 0.0
        %1340 = vmatprep.subr.mxu0 0.0
        %1341 = vmatpush1.msra.mxu0 0.0
        %1342 = vmatprep.subr.mxu0 0.0
        %1343 = vmatpush1.msra.mxu0 0.0
        %1344 = vmatprep.subr.mxu0 0.0
        %1345 = vmatpush1.msra.mxu0 0.0
        %1346 = vmatprep.subr.mxu0 0.0
        %1347 = vmatpush1.msra.mxu0 0.0
        %1348 = vmatprep.subr.mxu0 0.0
        %1349 = vmatpush1.msra.mxu0 0.0
        %1350 = vmatprep.subr.mxu0 0.0
        %1351 = vmatpush1.msra.mxu0 0.0
        %1352 = vmatprep.subr.mxu0 0.0
        %1353 = vmatpush1.msra.mxu0 0.0
        %1354 = vmatprep.subr.mxu0 0.0
        %1355 = vmatpush1.msra.mxu0 0.0
        %1356 = vmatprep.subr.mxu0 0.0
        %1357 = vmatpush1.msra.mxu0 0.0
        %1358 = vmatprep.subr.mxu0 0.0
        %1359 = vmatpush1.msra.mxu0 0.0
        %1360 = vmatprep.subr.mxu0 0.0
        %1361 = vmatpush1.msra.mxu0 0.0
        %1362 = vmatprep.subr.mxu0 0.0
        %1363 = vmatpush1.msra.mxu0 0.0
        %1364 = vmatprep.subr.mxu0 0.0
        %1365 = vmatpush1.msra.mxu0 0.0
        %1366 = vmatprep.subr.mxu0 0.0
        %1367 = vmatpush1.msra.mxu0 0.0
        %1368 = vmatprep.mubr.f32.mxu0 0.0
        %1369 = vmatmul.mubr.f32.gmra.mrb[0].mxu0 %v1302
        %v1370 = vpop.f32.mrb[0].mxu0
        %v1371 = vadd.f32 0.0, %v1370
        %v1372 = vpop.f32.mrb[0].mxu0
        %1373 = vdwg.mxu0
        %v1374 = vadd.f32 %v1296, %v1371
        %s1375 = scalar_lea.vmem %s3, 24
        %v1376 = vld [vmem:[%s1375] sm:$0xff]
        %v1378 = vsel %vm517, %v1117, 0
        %1380 = vmatprep.subr.mxu0 0.0
        %1381 = vmatpush1.msra.mxu0 %v1376
        %1382 = vmatprep.subr.mxu0 0.0
        %1383 = vmatpush1.msra.mxu0 0.0
        %1384 = vmatprep.subr.mxu0 0.0
        %1385 = vmatpush1.msra.mxu0 0.0
        %1386 = vmatprep.subr.mxu0 0.0
        %1387 = vmatpush1.msra.mxu0 0.0
        %1388 = vmatprep.subr.mxu0 0.0
        %1389 = vmatpush1.msra.mxu0 0.0
        %1390 = vmatprep.subr.mxu0 0.0
        %1391 = vmatpush1.msra.mxu0 0.0
        %1392 = vmatprep.subr.mxu0 0.0
        %1393 = vmatpush1.msra.mxu0 0.0
        %1394 = vmatprep.subr.mxu0 0.0
        %1395 = vmatpush1.msra.mxu0 0.0
        %1396 = vmatprep.subr.mxu0 0.0
        %1397 = vmatpush1.msra.mxu0 0.0
        %1398 = vmatprep.subr.mxu0 0.0
        %1399 = vmatpush1.msra.mxu0 0.0
        %1400 = vmatprep.subr.mxu0 0.0
        %1401 = vmatpush1.msra.mxu0 0.0
        %1402 = vmatprep.subr.mxu0 0.0
        %1403 = vmatpush1.msra.mxu0 0.0
        %1404 = vmatprep.subr.mxu0 0.0
        %1405 = vmatpush1.msra.mxu0 0.0
        %1406 = vmatprep.subr.mxu0 0.0
        %1407 = vmatpush1.msra.mxu0 0.0
        %1408 = vmatprep.subr.mxu0 0.0
        %1409 = vmatpush1.msra.mxu0 0.0
        %1410 = vmatprep.subr.mxu0 0.0
        %1411 = vmatpush1.msra.mxu0 0.0
        %1412 = vmatprep.subr.mxu0 0.0
        %1413 = vmatpush1.msra.mxu0 0.0
        %1414 = vmatprep.subr.mxu0 0.0
        %1415 = vmatpush1.msra.mxu0 0.0
        %1416 = vmatprep.subr.mxu0 0.0
        %1417 = vmatpush1.msra.mxu0 0.0
        %1418 = vmatprep.subr.mxu0 0.0
        %1419 = vmatpush1.msra.mxu0 0.0
        %1420 = vmatprep.subr.mxu0 0.0
        %1421 = vmatpush1.msra.mxu0 0.0
        %1422 = vmatprep.subr.mxu0 0.0
        %1423 = vmatpush1.msra.mxu0 0.0
        %1424 = vmatprep.subr.mxu0 0.0
        %1425 = vmatpush1.msra.mxu0 0.0
        %1426 = vmatprep.subr.mxu0 0.0
        %1427 = vmatpush1.msra.mxu0 0.0
        %1428 = vmatprep.subr.mxu0 0.0
        %1429 = vmatpush1.msra.mxu0 0.0
        %1430 = vmatprep.subr.mxu0 0.0
        %1431 = vmatpush1.msra.mxu0 0.0
        %1432 = vmatprep.subr.mxu0 0.0
        %1433 = vmatpush1.msra.mxu0 0.0
        %1434 = vmatprep.subr.mxu0 0.0
        %1435 = vmatpush1.msra.mxu0 0.0
        %1436 = vmatprep.subr.mxu0 0.0
        %1437 = vmatpush1.msra.mxu0 0.0
        %1438 = vmatprep.subr.mxu0 0.0
        %1439 = vmatpush1.msra.mxu0 0.0
        %1440 = vmatprep.subr.mxu0 0.0
        %1441 = vmatpush1.msra.mxu0 0.0
        %1442 = vmatprep.subr.mxu0 0.0
        %1443 = vmatpush1.msra.mxu0 0.0
        %1444 = vmatprep.mubr.f32.mxu0 0.0
        %1445 = vmatmul.mubr.f32.gmra.mrb[0].mxu0 %v1378
        %v1446 = vpop.f32.mrb[0].mxu0
        %v1447 = vadd.f32 0.0, %v1446
        %v1448 = vpop.f32.mrb[0].mxu0
        %1449 = vdwg.mxu0
        %v1450 = vadd.f32 %v1374, %v1447
        %s1451 = scalar_lea.vmem %s3, 32
        %v1452 = vld [vmem:[%s1451] sm:$0xff]
        %v1454 = vsel %vm517, %v1013, 0
        %1456 = vmatprep.subr.mxu0 0.0
        %1457 = vmatpush1.msra.mxu0 %v1452
        %1458 = vmatprep.subr.mxu0 0.0
        %1459 = vmatpush1.msra.mxu0 0.0
        %1460 = vmatprep.subr.mxu0 0.0
        %1461 = vmatpush1.msra.mxu0 0.0
        %1462 = vmatprep.subr.mxu0 0.0
        %1463 = vmatpush1.msra.mxu0 0.0
        %1464 = vmatprep.subr.mxu0 0.0
        %1465 = vmatpush1.msra.mxu0 0.0
        %1466 = vmatprep.subr.mxu0 0.0
        %1467 = vmatpush1.msra.mxu0 0.0
        %1468 = vmatprep.subr.mxu0 0.0
        %1469 = vmatpush1.msra.mxu0 0.0
        %1470 = vmatprep.subr.mxu0 0.0
        %1471 = vmatpush1.msra.mxu0 0.0
        %1472 = vmatprep.subr.mxu0 0.0
        %1473 = vmatpush1.msra.mxu0 0.0
        %1474 = vmatprep.subr.mxu0 0.0
        %1475 = vmatpush1.msra.mxu0 0.0
        %1476 = vmatprep.subr.mxu0 0.0
        %1477 = vmatpush1.msra.mxu0 0.0
        %1478 = vmatprep.subr.mxu0 0.0
        %1479 = vmatpush1.msra.mxu0 0.0
        %1480 = vmatprep.subr.mxu0 0.0
        %1481 = vmatpush1.msra.mxu0 0.0
        %1482 = vmatprep.subr.mxu0 0.0
        %1483 = vmatpush1.msra.mxu0 0.0
        %1484 = vmatprep.subr.mxu0 0.0
        %1485 = vmatpush1.msra.mxu0 0.0
        %1486 = vmatprep.subr.mxu0 0.0
        %1487 = vmatpush1.msra.mxu0 0.0
        %1488 = vmatprep.subr.mxu0 0.0
        %1489 = vmatpush1.msra.mxu0 0.0
        %1490 = vmatprep.subr.mxu0 0.0
        %1491 = vmatpush1.msra.mxu0 0.0
        %1492 = vmatprep.subr.mxu0 0.0
        %1493 = vmatpush1.msra.mxu0 0.0
        %1494 = vmatprep.subr.mxu0 0.0
        %1495 = vmatpush1.msra.mxu0 0.0
        %1496 = vmatprep.subr.mxu0 0.0
        %1497 = vmatpush1.msra.mxu0 0.0
        %1498 = vmatprep.subr.mxu0 0.0
        %1499 = vmatpush1.msra.mxu0 0.0
        %1500 = vmatprep.subr.mxu0 0.0
        %1501 = vmatpush1.msra.mxu0 0.0
        %1502 = vmatprep.subr.mxu0 0.0
        %1503 = vmatpush1.msra.mxu0 0.0
        %1504 = vmatprep.subr.mxu0 0.0
        %1505 = vmatpush1.msra.mxu0 0.0
        %1506 = vmatprep.subr.mxu0 0.0
        %1507 = vmatpush1.msra.mxu0 0.0
        %1508 = vmatprep.subr.mxu0 0.0
        %1509 = vmatpush1.msra.mxu0 0.0
        %1510 = vmatprep.subr.mxu0 0.0
        %1511 = vmatpush1.msra.mxu0 0.0
        %1512 = vmatprep.subr.mxu0 0.0
        %1513 = vmatpush1.msra.mxu0 0.0
        %1514 = vmatprep.subr.mxu0 0.0
        %1515 = vmatpush1.msra.mxu0 0.0
        %1516 = vmatprep.subr.mxu0 0.0
        %1517 = vmatpush1.msra.mxu0 0.0
        %1518 = vmatprep.subr.mxu0 0.0
        %1519 = vmatpush1.msra.mxu0 0.0
        %1520 = vmatprep.mubr.f32.mxu0 0.0
        %1521 = vmatmul.mubr.f32.gmra.mrb[0].mxu0 %v1454
        %v1522 = vpop.f32.mrb[0].mxu0
        %v1523 = vadd.f32 0.0, %v1522
        %v1524 = vpop.f32.mrb[0].mxu0
        %1525 = vdwg.mxu0
        %v1526 = vadd.f32 %v1450, %v1523
        %s1527 = scalar_lea.vmem %s3, 40
        %v1528 = vld [vmem:[%s1527] sm:$0xff]
        %v1530 = vsel %vm517, %v1122, 0
        %1532 = vmatprep.subr.mxu0 0.0
        %1533 = vmatpush1.msra.mxu0 %v1528
        %1534 = vmatprep.subr.mxu0 0.0
        %1535 = vmatpush1.msra.mxu0 0.0
        %1536 = vmatprep.subr.mxu0 0.0
        %1537 = vmatpush1.msra.mxu0 0.0
        %1538 = vmatprep.subr.mxu0 0.0
        %1539 = vmatpush1.msra.mxu0 0.0
        %1540 = vmatprep.subr.mxu0 0.0
        %1541 = vmatpush1.msra.mxu0 0.0
        %1542 = vmatprep.subr.mxu0 0.0
        %1543 = vmatpush1.msra.mxu0 0.0
        %1544 = vmatprep.subr.mxu0 0.0
        %1545 = vmatpush1.msra.mxu0 0.0
        %1546 = vmatprep.subr.mxu0 0.0
        %1547 = vmatpush1.msra.mxu0 0.0
        %1548 = vmatprep.subr.mxu0 0.0
        %1549 = vmatpush1.msra.mxu0 0.0
        %1550 = vmatprep.subr.mxu0 0.0
        %1551 = vmatpush1.msra.mxu0 0.0
        %1552 = vmatprep.subr.mxu0 0.0
        %1553 = vmatpush1.msra.mxu0 0.0
        %1554 = vmatprep.subr.mxu0 0.0
        %1555 = vmatpush1.msra.mxu0 0.0
        %1556 = vmatprep.subr.mxu0 0.0
        %1557 = vmatpush1.msra.mxu0 0.0
        %1558 = vmatprep.subr.mxu0 0.0
        %1559 = vmatpush1.msra.mxu0 0.0
        %1560 = vmatprep.subr.mxu0 0.0
        %1561 = vmatpush1.msra.mxu0 0.0
        %1562 = vmatprep.subr.mxu0 0.0
        %1563 = vmatpush1.msra.mxu0 0.0
        %1564 = vmatprep.subr.mxu0 0.0
        %1565 = vmatpush1.msra.mxu0 0.0
        %1566 = vmatprep.subr.mxu0 0.0
        %1567 = vmatpush1.msra.mxu0 0.0
        %1568 = vmatprep.subr.mxu0 0.0
        %1569 = vmatpush1.msra.mxu0 0.0
        %1570 = vmatprep.subr.mxu0 0.0
        %1571 = vmatpush1.msra.mxu0 0.0
        %1572 = vmatprep.subr.mxu0 0.0
        %1573 = vmatpush1.msra.mxu0 0.0
        %1574 = vmatprep.subr.mxu0 0.0
        %1575 = vmatpush1.msra.mxu0 0.0
        %1576 = vmatprep.subr.mxu0 0.0
        %1577 = vmatpush1.msra.mxu0 0.0
        %1578 = vmatprep.subr.mxu0 0.0
        %1579 = vmatpush1.msra.mxu0 0.0
        %1580 = vmatprep.subr.mxu0 0.0
        %1581 = vmatpush1.msra.mxu0 0.0
        %1582 = vmatprep.subr.mxu0 0.0
        %1583 = vmatpush1.msra.mxu0 0.0
        %1584 = vmatprep.subr.mxu0 0.0
        %1585 = vmatpush1.msra.mxu0 0.0
        %1586 = vmatprep.subr.mxu0 0.0
        %1587 = vmatpush1.msra.mxu0 0.0
        %1588 = vmatprep.subr.mxu0 0.0
        %1589 = vmatpush1.msra.mxu0 0.0
        %1590 = vmatprep.subr.mxu0 0.0
        %1591 = vmatpush1.msra.mxu0 0.0
        %1592 = vmatprep.subr.mxu0 0.0
        %1593 = vmatpush1.msra.mxu0 0.0
        %1594 = vmatprep.subr.mxu0 0.0
        %1595 = vmatpush1.msra.mxu0 0.0
        %1596 = vmatprep.mubr.f32.mxu0 0.0
        %1597 = vmatmul.mubr.f32.gmra.mrb[0].mxu0 %v1530
        %v1598 = vpop.f32.mrb[0].mxu0
        %v1599 = vadd.f32 0.0, %v1598
        %v1600 = vpop.f32.mrb[0].mxu0
        %1601 = vdwg.mxu0
        %v1602 = vadd.f32 %v1526, %v1599
        %s1603 = scalar_lea.vmem %s3, 48
        %v1604 = vld [vmem:[%s1603] sm:$0xff]
        %v1606 = vsel %vm517, %v1018, 0
        %1608 = vmatprep.subr.mxu0 0.0
        %1609 = vmatpush1.msra.mxu0 %v1604
        %1610 = vmatprep.subr.mxu0 0.0
        %1611 = vmatpush1.msra.mxu0 0.0
        %1612 = vmatprep.subr.mxu0 0.0
        %1613 = vmatpush1.msra.mxu0 0.0
        %1614 = vmatprep.subr.mxu0 0.0
        %1615 = vmatpush1.msra.mxu0 0.0
        %1616 = vmatprep.subr.mxu0 0.0
        %1617 = vmatpush1.msra.mxu0 0.0
        %1618 = vmatprep.subr.mxu0 0.0
        %1619 = vmatpush1.msra.mxu0 0.0
        %1620 = vmatprep.subr.mxu0 0.0
        %1621 = vmatpush1.msra.mxu0 0.0
        %1622 = vmatprep.subr.mxu0 0.0
        %1623 = vmatpush1.msra.mxu0 0.0
        %1624 = vmatprep.subr.mxu0 0.0
        %1625 = vmatpush1.msra.mxu0 0.0
        %1626 = vmatprep.subr.mxu0 0.0
        %1627 = vmatpush1.msra.mxu0 0.0
        %1628 = vmatprep.subr.mxu0 0.0
        %1629 = vmatpush1.msra.mxu0 0.0
        %1630 = vmatprep.subr.mxu0 0.0
        %1631 = vmatpush1.msra.mxu0 0.0
        %1632 = vmatprep.subr.mxu0 0.0
        %1633 = vmatpush1.msra.mxu0 0.0
        %1634 = vmatprep.subr.mxu0 0.0
        %1635 = vmatpush1.msra.mxu0 0.0
        %1636 = vmatprep.subr.mxu0 0.0
        %1637 = vmatpush1.msra.mxu0 0.0
        %1638 = vmatprep.subr.mxu0 0.0
        %1639 = vmatpush1.msra.mxu0 0.0
        %1640 = vmatprep.subr.mxu0 0.0
        %1641 = vmatpush1.msra.mxu0 0.0
        %1642 = vmatprep.subr.mxu0 0.0
        %1643 = vmatpush1.msra.mxu0 0.0
        %1644 = vmatprep.subr.mxu0 0.0
        %1645 = vmatpush1.msra.mxu0 0.0
        %1646 = vmatprep.subr.mxu0 0.0
        %1647 = vmatpush1.msra.mxu0 0.0
        %1648 = vmatprep.subr.mxu0 0.0
        %1649 = vmatpush1.msra.mxu0 0.0
        %1650 = vmatprep.subr.mxu0 0.0
        %1651 = vmatpush1.msra.mxu0 0.0
        %1652 = vmatprep.subr.mxu0 0.0
        %1653 = vmatpush1.msra.mxu0 0.0
        %1654 = vmatprep.subr.mxu0 0.0
        %1655 = vmatpush1.msra.mxu0 0.0
        %1656 = vmatprep.subr.mxu0 0.0
        %1657 = vmatpush1.msra.mxu0 0.0
        %1658 = vmatprep.subr.mxu0 0.0
        %1659 = vmatpush1.msra.mxu0 0.0
        %1660 = vmatprep.subr.mxu0 0.0
        %1661 = vmatpush1.msra.mxu0 0.0
        %1662 = vmatprep.subr.mxu0 0.0
        %1663 = vmatpush1.msra.mxu0 0.0
        %1664 = vmatprep.subr.mxu0 0.0
        %1665 = vmatpush1.msra.mxu0 0.0
        %1666 = vmatprep.subr.mxu0 0.0
        %1667 = vmatpush1.msra.mxu0 0.0
        %1668 = vmatprep.subr.mxu0 0.0
        %1669 = vmatpush1.msra.mxu0 0.0
        %1670 = vmatprep.subr.mxu0 0.0
        %1671 = vmatpush1.msra.mxu0 0.0
        %1672 = vmatprep.mubr.f32.mxu0 0.0
        %1673 = vmatmul.mubr.f32.gmra.mrb[0].mxu0 %v1606
        %v1674 = vpop.f32.mrb[0].mxu0
        %v1675 = vadd.f32 0.0, %v1674
        %v1676 = vpop.f32.mrb[0].mxu0
        %1677 = vdwg.mxu0
        %v1678 = vadd.f32 %v1602, %v1675
        %s1679 = scalar_lea.vmem %s3, 56
        %v1680 = vld [vmem:[%s1679] sm:$0xff]
        %v1682 = vsel %vm517, %v1127, 0
        %1684 = vmatprep.subr.mxu0 0.0
        %1685 = vmatpush1.msra.mxu0 %v1680
        %1686 = vmatprep.subr.mxu0 0.0
        %1687 = vmatpush1.msra.mxu0 0.0
        %1688 = vmatprep.subr.mxu0 0.0
        %1689 = vmatpush1.msra.mxu0 0.0
        %1690 = vmatprep.subr.mxu0 0.0
        %1691 = vmatpush1.msra.mxu0 0.0
        %1692 = vmatprep.subr.mxu0 0.0
        %1693 = vmatpush1.msra.mxu0 0.0
        %1694 = vmatprep.subr.mxu0 0.0
        %1695 = vmatpush1.msra.mxu0 0.0
        %1696 = vmatprep.subr.mxu0 0.0
        %1697 = vmatpush1.msra.mxu0 0.0
        %1698 = vmatprep.subr.mxu0 0.0
        %1699 = vmatpush1.msra.mxu0 0.0
        %1700 = vmatprep.subr.mxu0 0.0
        %1701 = vmatpush1.msra.mxu0 0.0
        %1702 = vmatprep.subr.mxu0 0.0
        %1703 = vmatpush1.msra.mxu0 0.0
        %1704 = vmatprep.subr.mxu0 0.0
        %1705 = vmatpush1.msra.mxu0 0.0
        %1706 = vmatprep.subr.mxu0 0.0
        %1707 = vmatpush1.msra.mxu0 0.0
        %1708 = vmatprep.subr.mxu0 0.0
        %1709 = vmatpush1.msra.mxu0 0.0
        %1710 = vmatprep.subr.mxu0 0.0
        %1711 = vmatpush1.msra.mxu0 0.0
        %1712 = vmatprep.subr.mxu0 0.0
        %1713 = vmatpush1.msra.mxu0 0.0
        %1714 = vmatprep.subr.mxu0 0.0
        %1715 = vmatpush1.msra.mxu0 0.0
        %1716 = vmatprep.subr.mxu0 0.0
        %1717 = vmatpush1.msra.mxu0 0.0
        %1718 = vmatprep.subr.mxu0 0.0
        %1719 = vmatpush1.msra.mxu0 0.0
        %1720 = vmatprep.subr.mxu0 0.0
        %1721 = vmatpush1.msra.mxu0 0.0
        %1722 = vmatprep.subr.mxu0 0.0
        %1723 = vmatpush1.msra.mxu0 0.0
        %1724 = vmatprep.subr.mxu0 0.0
        %1725 = vmatpush1.msra.mxu0 0.0
        %1726 = vmatprep.subr.mxu0 0.0
        %1727 = vmatpush1.msra.mxu0 0.0
        %1728 = vmatprep.subr.mxu0 0.0
        %1729 = vmatpush1.msra.mxu0 0.0
        %1730 = vmatprep.subr.mxu0 0.0
        %1731 = vmatpush1.msra.mxu0 0.0
        %1732 = vmatprep.subr.mxu0 0.0
        %1733 = vmatpush1.msra.mxu0 0.0
        %1734 = vmatprep.subr.mxu0 0.0
        %1735 = vmatpush1.msra.mxu0 0.0
        %1736 = vmatprep.subr.mxu0 0.0
        %1737 = vmatpush1.msra.mxu0 0.0
        %1738 = vmatprep.subr.mxu0 0.0
        %1739 = vmatpush1.msra.mxu0 0.0
        %1740 = vmatprep.subr.mxu0 0.0
        %1741 = vmatpush1.msra.mxu0 0.0
        %1742 = vmatprep.subr.mxu0 0.0
        %1743 = vmatpush1.msra.mxu0 0.0
        %1744 = vmatprep.subr.mxu0 0.0
        %1745 = vmatpush1.msra.mxu0 0.0
        %1746 = vmatprep.subr.mxu0 0.0
        %1747 = vmatpush1.msra.mxu0 0.0
        %1748 = vmatprep.mubr.f32.mxu0 0.0
        %1749 = vmatmul.mubr.f32.gmra.mrb[0].mxu0 %v1682
        %v1750 = vpop.f32.mrb[0].mxu0
        %v1751 = vadd.f32 0.0, %v1750
        %v1752 = vpop.f32.mrb[0].mxu0
        %1753 = vdwg.mxu0
        %v1754 = vadd.f32 %v1678, %v1751
        %s1755 = scalar_lea.vmem %s3, 64
        %v1756 = vld [vmem:[%s1755] sm:$0xff]
        %v1758 = vsel %vm517, %v1023, 0
        %1760 = vmatprep.subr.mxu0 0.0
        %1761 = vmatpush1.msra.mxu0 %v1756
        %1762 = vmatprep.subr.mxu0 0.0
        %1763 = vmatpush1.msra.mxu0 0.0
        %1764 = vmatprep.subr.mxu0 0.0
        %1765 = vmatpush1.msra.mxu0 0.0
        %1766 = vmatprep.subr.mxu0 0.0
        %1767 = vmatpush1.msra.mxu0 0.0
        %1768 = vmatprep.subr.mxu0 0.0
        %1769 = vmatpush1.msra.mxu0 0.0
        %1770 = vmatprep.subr.mxu0 0.0
        %1771 = vmatpush1.msra.mxu0 0.0
        %1772 = vmatprep.subr.mxu0 0.0
        %1773 = vmatpush1.msra.mxu0 0.0
        %1774 = vmatprep.subr.mxu0 0.0
        %1775 = vmatpush1.msra.mxu0 0.0
        %1776 = vmatprep.subr.mxu0 0.0
        %1777 = vmatpush1.msra.mxu0 0.0
        %1778 = vmatprep.subr.mxu0 0.0
        %1779 = vmatpush1.msra.mxu0 0.0
        %1780 = vmatprep.subr.mxu0 0.0
        %1781 = vmatpush1.msra.mxu0 0.0
        %1782 = vmatprep.subr.mxu0 0.0
        %1783 = vmatpush1.msra.mxu0 0.0
        %1784 = vmatprep.subr.mxu0 0.0
        %1785 = vmatpush1.msra.mxu0 0.0
        %1786 = vmatprep.subr.mxu0 0.0
        %1787 = vmatpush1.msra.mxu0 0.0
        %1788 = vmatprep.subr.mxu0 0.0
        %1789 = vmatpush1.msra.mxu0 0.0
        %1790 = vmatprep.subr.mxu0 0.0
        %1791 = vmatpush1.msra.mxu0 0.0
        %1792 = vmatprep.subr.mxu0 0.0
        %1793 = vmatpush1.msra.mxu0 0.0
        %1794 = vmatprep.subr.mxu0 0.0
        %1795 = vmatpush1.msra.mxu0 0.0
        %1796 = vmatprep.subr.mxu0 0.0
        %1797 = vmatpush1.msra.mxu0 0.0
        %1798 = vmatprep.subr.mxu0 0.0
        %1799 = vmatpush1.msra.mxu0 0.0
        %1800 = vmatprep.subr.mxu0 0.0
        %1801 = vmatpush1.msra.mxu0 0.0
        %1802 = vmatprep.subr.mxu0 0.0
        %1803 = vmatpush1.msra.mxu0 0.0
        %1804 = vmatprep.subr.mxu0 0.0
        %1805 = vmatpush1.msra.mxu0 0.0
        %1806 = vmatprep.subr.mxu0 0.0
        %1807 = vmatpush1.msra.mxu0 0.0
        %1808 = vmatprep.subr.mxu0 0.0
        %1809 = vmatpush1.msra.mxu0 0.0
        %1810 = vmatprep.subr.mxu0 0.0
        %1811 = vmatpush1.msra.mxu0 0.0
        %1812 = vmatprep.subr.mxu0 0.0
        %1813 = vmatpush1.msra.mxu0 0.0
        %1814 = vmatprep.subr.mxu0 0.0
        %1815 = vmatpush1.msra.mxu0 0.0
        %1816 = vmatprep.subr.mxu0 0.0
        %1817 = vmatpush1.msra.mxu0 0.0
        %1818 = vmatprep.subr.mxu0 0.0
        %1819 = vmatpush1.msra.mxu0 0.0
        %1820 = vmatprep.subr.mxu0 0.0
        %1821 = vmatpush1.msra.mxu0 0.0
        %1822 = vmatprep.subr.mxu0 0.0
        %1823 = vmatpush1.msra.mxu0 0.0
        %1824 = vmatprep.mubr.f32.mxu0 0.0
        %1825 = vmatmul.mubr.f32.gmra.mrb[0].mxu0 %v1758
        %v1826 = vpop.f32.mrb[0].mxu0
        %v1827 = vadd.f32 0.0, %v1826
        %v1828 = vpop.f32.mrb[0].mxu0
        %1829 = vdwg.mxu0
        %v1830 = vadd.f32 %v1754, %v1827
        %s1831 = scalar_lea.vmem %s3, 72
        %v1832 = vld [vmem:[%s1831] sm:$0xff]
        %v1834 = vsel %vm517, %v1132, 0
        %1836 = vmatprep.subr.mxu0 0.0
        %1837 = vmatpush1.msra.mxu0 %v1832
        %1838 = vmatprep.subr.mxu0 0.0
        %1839 = vmatpush1.msra.mxu0 0.0
        %1840 = vmatprep.subr.mxu0 0.0
        %1841 = vmatpush1.msra.mxu0 0.0
        %1842 = vmatprep.subr.mxu0 0.0
        %1843 = vmatpush1.msra.mxu0 0.0
        %1844 = vmatprep.subr.mxu0 0.0
        %1845 = vmatpush1.msra.mxu0 0.0
        %1846 = vmatprep.subr.mxu0 0.0
        %1847 = vmatpush1.msra.mxu0 0.0
        %1848 = vmatprep.subr.mxu0 0.0
        %1849 = vmatpush1.msra.mxu0 0.0
        %1850 = vmatprep.subr.mxu0 0.0
        %1851 = vmatpush1.msra.mxu0 0.0
        %1852 = vmatprep.subr.mxu0 0.0
        %1853 = vmatpush1.msra.mxu0 0.0
        %1854 = vmatprep.subr.mxu0 0.0
        %1855 = vmatpush1.msra.mxu0 0.0
        %1856 = vmatprep.subr.mxu0 0.0
        %1857 = vmatpush1.msra.mxu0 0.0
        %1858 = vmatprep.subr.mxu0 0.0
        %1859 = vmatpush1.msra.mxu0 0.0
        %1860 = vmatprep.subr.mxu0 0.0
        %1861 = vmatpush1.msra.mxu0 0.0
        %1862 = vmatprep.subr.mxu0 0.0
        %1863 = vmatpush1.msra.mxu0 0.0
        %1864 = vmatprep.subr.mxu0 0.0
        %1865 = vmatpush1.msra.mxu0 0.0
        %1866 = vmatprep.subr.mxu0 0.0
        %1867 = vmatpush1.msra.mxu0 0.0
        %1868 = vmatprep.subr.mxu0 0.0
        %1869 = vmatpush1.msra.mxu0 0.0
        %1870 = vmatprep.subr.mxu0 0.0
        %1871 = vmatpush1.msra.mxu0 0.0
        %1872 = vmatprep.subr.mxu0 0.0
        %1873 = vmatpush1.msra.mxu0 0.0
        %1874 = vmatprep.subr.mxu0 0.0
        %1875 = vmatpush1.msra.mxu0 0.0
        %1876 = vmatprep.subr.mxu0 0.0
        %1877 = vmatpush1.msra.mxu0 0.0
        %1878 = vmatprep.subr.mxu0 0.0
        %1879 = vmatpush1.msra.mxu0 0.0
        %1880 = vmatprep.subr.mxu0 0.0
        %1881 = vmatpush1.msra.mxu0 0.0
        %1882 = vmatprep.subr.mxu0 0.0
        %1883 = vmatpush1.msra.mxu0 0.0
        %1884 = vmatprep.subr.mxu0 0.0
        %1885 = vmatpush1.msra.mxu0 0.0
        %1886 = vmatprep.subr.mxu0 0.0
        %1887 = vmatpush1.msra.mxu0 0.0
        %1888 = vmatprep.subr.mxu0 0.0
        %1889 = vmatpush1.msra.mxu0 0.0
        %1890 = vmatprep.subr.mxu0 0.0
        %1891 = vmatpush1.msra.mxu0 0.0
        %1892 = vmatprep.subr.mxu0 0.0
        %1893 = vmatpush1.msra.mxu0 0.0
        %1894 = vmatprep.subr.mxu0 0.0
        %1895 = vmatpush1.msra.mxu0 0.0
        %1896 = vmatprep.subr.mxu0 0.0
        %1897 = vmatpush1.msra.mxu0 0.0
        %1898 = vmatprep.subr.mxu0 0.0
        %1899 = vmatpush1.msra.mxu0 0.0
        %1900 = vmatprep.mubr.f32.mxu0 0.0
        %1901 = vmatmul.mubr.f32.gmra.mrb[0].mxu0 %v1834
        %v1902 = vpop.f32.mrb[0].mxu0
        %v1903 = vadd.f32 0.0, %v1902
        %v1904 = vpop.f32.mrb[0].mxu0
        %1905 = vdwg.mxu0
        %v1906 = vadd.f32 %v1830, %v1903
        %s1907 = scalar_lea.vmem %s3, 80
        %v1908 = vld [vmem:[%s1907] sm:$0xff]
        %v1910 = vsel %vm517, %v1028, 0
        %1912 = vmatprep.subr.mxu0 0.0
        %1913 = vmatpush1.msra.mxu0 %v1908
        %1914 = vmatprep.subr.mxu0 0.0
        %1915 = vmatpush1.msra.mxu0 0.0
        %1916 = vmatprep.subr.mxu0 0.0
        %1917 = vmatpush1.msra.mxu0 0.0
        %1918 = vmatprep.subr.mxu0 0.0
        %1919 = vmatpush1.msra.mxu0 0.0
        %1920 = vmatprep.subr.mxu0 0.0
        %1921 = vmatpush1.msra.mxu0 0.0
        %1922 = vmatprep.subr.mxu0 0.0
        %1923 = vmatpush1.msra.mxu0 0.0
        %1924 = vmatprep.subr.mxu0 0.0
        %1925 = vmatpush1.msra.mxu0 0.0
        %1926 = vmatprep.subr.mxu0 0.0
        %1927 = vmatpush1.msra.mxu0 0.0
        %1928 = vmatprep.subr.mxu0 0.0
        %1929 = vmatpush1.msra.mxu0 0.0
        %1930 = vmatprep.subr.mxu0 0.0
        %1931 = vmatpush1.msra.mxu0 0.0
        %1932 = vmatprep.subr.mxu0 0.0
        %1933 = vmatpush1.msra.mxu0 0.0
        %1934 = vmatprep.subr.mxu0 0.0
        %1935 = vmatpush1.msra.mxu0 0.0
        %1936 = vmatprep.subr.mxu0 0.0
        %1937 = vmatpush1.msra.mxu0 0.0
        %1938 = vmatprep.subr.mxu0 0.0
        %1939 = vmatpush1.msra.mxu0 0.0
        %1940 = vmatprep.subr.mxu0 0.0
        %1941 = vmatpush1.msra.mxu0 0.0
        %1942 = vmatprep.subr.mxu0 0.0
        %1943 = vmatpush1.msra.mxu0 0.0
        %1944 = vmatprep.subr.mxu0 0.0
        %1945 = vmatpush1.msra.mxu0 0.0
        %1946 = vmatprep.subr.mxu0 0.0
        %1947 = vmatpush1.msra.mxu0 0.0
        %1948 = vmatprep.subr.mxu0 0.0
        %1949 = vmatpush1.msra.mxu0 0.0
        %1950 = vmatprep.subr.mxu0 0.0
        %1951 = vmatpush1.msra.mxu0 0.0
        %1952 = vmatprep.subr.mxu0 0.0
        %1953 = vmatpush1.msra.mxu0 0.0
        %1954 = vmatprep.subr.mxu0 0.0
        %1955 = vmatpush1.msra.mxu0 0.0
        %1956 = vmatprep.subr.mxu0 0.0
        %1957 = vmatpush1.msra.mxu0 0.0
        %1958 = vmatprep.subr.mxu0 0.0
        %1959 = vmatpush1.msra.mxu0 0.0
        %1960 = vmatprep.subr.mxu0 0.0
        %1961 = vmatpush1.msra.mxu0 0.0
        %1962 = vmatprep.subr.mxu0 0.0
        %1963 = vmatpush1.msra.mxu0 0.0
        %1964 = vmatprep.subr.mxu0 0.0
        %1965 = vmatpush1.msra.mxu0 0.0
        %1966 = vmatprep.subr.mxu0 0.0
        %1967 = vmatpush1.msra.mxu0 0.0
        %1968 = vmatprep.subr.mxu0 0.0
        %1969 = vmatpush1.msra.mxu0 0.0
        %1970 = vmatprep.subr.mxu0 0.0
        %1971 = vmatpush1.msra.mxu0 0.0
        %1972 = vmatprep.subr.mxu0 0.0
        %1973 = vmatpush1.msra.mxu0 0.0
        %1974 = vmatprep.subr.mxu0 0.0
        %1975 = vmatpush1.msra.mxu0 0.0
        %1976 = vmatprep.mubr.f32.mxu0 0.0
        %1977 = vmatmul.mubr.f32.gmra.mrb[0].mxu0 %v1910
        %v1978 = vpop.f32.mrb[0].mxu0
        %v1979 = vadd.f32 0.0, %v1978
        %v1980 = vpop.f32.mrb[0].mxu0
        %1981 = vdwg.mxu0
        %v1982 = vadd.f32 %v1906, %v1979
        %s1983 = scalar_lea.vmem %s3, 88
        %v1984 = vld [vmem:[%s1983] sm:$0xff]
        %v1986 = vsel %vm517, %v1137, 0
        %1988 = vmatprep.subr.mxu0 0.0
        %1989 = vmatpush1.msra.mxu0 %v1984
        %1990 = vmatprep.subr.mxu0 0.0
        %1991 = vmatpush1.msra.mxu0 0.0
        %1992 = vmatprep.subr.mxu0 0.0
        %1993 = vmatpush1.msra.mxu0 0.0
        %1994 = vmatprep.subr.mxu0 0.0
        %1995 = vmatpush1.msra.mxu0 0.0
        %1996 = vmatprep.subr.mxu0 0.0
        %1997 = vmatpush1.msra.mxu0 0.0
        %1998 = vmatprep.subr.mxu0 0.0
        %1999 = vmatpush1.msra.mxu0 0.0
        %2000 = vmatprep.subr.mxu0 0.0
        %2001 = vmatpush1.msra.mxu0 0.0
        %2002 = vmatprep.subr.mxu0 0.0
        %2003 = vmatpush1.msra.mxu0 0.0
        %2004 = vmatprep.subr.mxu0 0.0
        %2005 = vmatpush1.msra.mxu0 0.0
        %2006 = vmatprep.subr.mxu0 0.0
        %2007 = vmatpush1.msra.mxu0 0.0
        %2008 = vmatprep.subr.mxu0 0.0
        %2009 = vmatpush1.msra.mxu0 0.0
        %2010 = vmatprep.subr.mxu0 0.0
        %2011 = vmatpush1.msra.mxu0 0.0
        %2012 = vmatprep.subr.mxu0 0.0
        %2013 = vmatpush1.msra.mxu0 0.0
        %2014 = vmatprep.subr.mxu0 0.0
        %2015 = vmatpush1.msra.mxu0 0.0
        %2016 = vmatprep.subr.mxu0 0.0
        %2017 = vmatpush1.msra.mxu0 0.0
        %2018 = vmatprep.subr.mxu0 0.0
        %2019 = vmatpush1.msra.mxu0 0.0
        %2020 = vmatprep.subr.mxu0 0.0
        %2021 = vmatpush1.msra.mxu0 0.0
        %2022 = vmatprep.subr.mxu0 0.0
        %2023 = vmatpush1.msra.mxu0 0.0
        %2024 = vmatprep.subr.mxu0 0.0
        %2025 = vmatpush1.msra.mxu0 0.0
        %2026 = vmatprep.subr.mxu0 0.0
        %2027 = vmatpush1.msra.mxu0 0.0
        %2028 = vmatprep.subr.mxu0 0.0
        %2029 = vmatpush1.msra.mxu0 0.0
        %2030 = vmatprep.subr.mxu0 0.0
        %2031 = vmatpush1.msra.mxu0 0.0
        %2032 = vmatprep.subr.mxu0 0.0
        %2033 = vmatpush1.msra.mxu0 0.0
        %2034 = vmatprep.subr.mxu0 0.0
        %2035 = vmatpush1.msra.mxu0 0.0
        %2036 = vmatprep.subr.mxu0 0.0
        %2037 = vmatpush1.msra.mxu0 0.0
        %2038 = vmatprep.subr.mxu0 0.0
        %2039 = vmatpush1.msra.mxu0 0.0
        %2040 = vmatprep.subr.mxu0 0.0
        %2041 = vmatpush1.msra.mxu0 0.0
        %2042 = vmatprep.subr.mxu0 0.0
        %2043 = vmatpush1.msra.mxu0 0.0
        %2044 = vmatprep.subr.mxu0 0.0
        %2045 = vmatpush1.msra.mxu0 0.0
        %2046 = vmatprep.subr.mxu0 0.0
        %2047 = vmatpush1.msra.mxu0 0.0
        %2048 = vmatprep.subr.mxu0 0.0
        %2049 = vmatpush1.msra.mxu0 0.0
        %2050 = vmatprep.subr.mxu0 0.0
        %2051 = vmatpush1.msra.mxu0 0.0
        %2052 = vmatprep.mubr.f32.mxu0 0.0
        %2053 = vmatmul.mubr.f32.gmra.mrb[0].mxu0 %v1986
        %v2054 = vpop.f32.mrb[0].mxu0
        %v2055 = vadd.f32 0.0, %v2054
        %v2056 = vpop.f32.mrb[0].mxu0
        %2057 = vdwg.mxu0
        %v2058 = vadd.f32 %v1982, %v2055
        %s2059 = scalar_lea.vmem %s3, 96
        %v2060 = vld [vmem:[%s2059] sm:$0xff]
        %v2062 = vsel %vm517, %v1033, 0
        %2064 = vmatprep.subr.mxu0 0.0
        %2065 = vmatpush1.msra.mxu0 %v2060
        %2066 = vmatprep.subr.mxu0 0.0
        %2067 = vmatpush1.msra.mxu0 0.0
        %2068 = vmatprep.subr.mxu0 0.0
        %2069 = vmatpush1.msra.mxu0 0.0
        %2070 = vmatprep.subr.mxu0 0.0
        %2071 = vmatpush1.msra.mxu0 0.0
        %2072 = vmatprep.subr.mxu0 0.0
        %2073 = vmatpush1.msra.mxu0 0.0
        %2074 = vmatprep.subr.mxu0 0.0
        %2075 = vmatpush1.msra.mxu0 0.0
        %2076 = vmatprep.subr.mxu0 0.0
        %2077 = vmatpush1.msra.mxu0 0.0
        %2078 = vmatprep.subr.mxu0 0.0
        %2079 = vmatpush1.msra.mxu0 0.0
        %2080 = vmatprep.subr.mxu0 0.0
        %2081 = vmatpush1.msra.mxu0 0.0
        %2082 = vmatprep.subr.mxu0 0.0
        %2083 = vmatpush1.msra.mxu0 0.0
        %2084 = vmatprep.subr.mxu0 0.0
        %2085 = vmatpush1.msra.mxu0 0.0
        %2086 = vmatprep.subr.mxu0 0.0
        %2087 = vmatpush1.msra.mxu0 0.0
        %2088 = vmatprep.subr.mxu0 0.0
        %2089 = vmatpush1.msra.mxu0 0.0
        %2090 = vmatprep.subr.mxu0 0.0
        %2091 = vmatpush1.msra.mxu0 0.0
        %2092 = vmatprep.subr.mxu0 0.0
        %2093 = vmatpush1.msra.mxu0 0.0
        %2094 = vmatprep.subr.mxu0 0.0
        %2095 = vmatpush1.msra.mxu0 0.0
        %2096 = vmatprep.subr.mxu0 0.0
        %2097 = vmatpush1.msra.mxu0 0.0
        %2098 = vmatprep.subr.mxu0 0.0
        %2099 = vmatpush1.msra.mxu0 0.0
        %2100 = vmatprep.subr.mxu0 0.0
        %2101 = vmatpush1.msra.mxu0 0.0
        %2102 = vmatprep.subr.mxu0 0.0
        %2103 = vmatpush1.msra.mxu0 0.0
        %2104 = vmatprep.subr.mxu0 0.0
        %2105 = vmatpush1.msra.mxu0 0.0
        %2106 = vmatprep.subr.mxu0 0.0
        %2107 = vmatpush1.msra.mxu0 0.0
        %2108 = vmatprep.subr.mxu0 0.0
        %2109 = vmatpush1.msra.mxu0 0.0
        %2110 = vmatprep.subr.mxu0 0.0
        %2111 = vmatpush1.msra.mxu0 0.0
        %2112 = vmatprep.subr.mxu0 0.0
        %2113 = vmatpush1.msra.mxu0 0.0
        %2114 = vmatprep.subr.mxu0 0.0
        %2115 = vmatpush1.msra.mxu0 0.0
        %2116 = vmatprep.subr.mxu0 0.0
        %2117 = vmatpush1.msra.mxu0 0.0
        %2118 = vmatprep.subr.mxu0 0.0
        %2119 = vmatpush1.msra.mxu0 0.0
        %2120 = vmatprep.subr.mxu0 0.0
        %2121 = vmatpush1.msra.mxu0 0.0
        %2122 = vmatprep.subr.mxu0 0.0
        %2123 = vmatpush1.msra.mxu0 0.0
        %2124 = vmatprep.subr.mxu0 0.0
        %2125 = vmatpush1.msra.mxu0 0.0
        %2126 = vmatprep.subr.mxu0 0.0
        %2127 = vmatpush1.msra.mxu0 0.0
        %2128 = vmatprep.mubr.f32.mxu0 0.0
        %2129 = vmatmul.mubr.f32.gmra.mrb[0].mxu0 %v2062
        %v2130 = vpop.f32.mrb[0].mxu0
        %v2131 = vadd.f32 0.0, %v2130
        %v2132 = vpop.f32.mrb[0].mxu0
        %2133 = vdwg.mxu0
        %v2134 = vadd.f32 %v2058, %v2131
        %s2135 = scalar_lea.vmem %s3, 104
        %v2136 = vld [vmem:[%s2135] sm:$0xff]
        %v2138 = vsel %vm517, %v1142, 0
        %2140 = vmatprep.subr.mxu0 0.0
        %2141 = vmatpush1.msra.mxu0 %v2136
        %2142 = vmatprep.subr.mxu0 0.0
        %2143 = vmatpush1.msra.mxu0 0.0
        %2144 = vmatprep.subr.mxu0 0.0
        %2145 = vmatpush1.msra.mxu0 0.0
        %2146 = vmatprep.subr.mxu0 0.0
        %2147 = vmatpush1.msra.mxu0 0.0
        %2148 = vmatprep.subr.mxu0 0.0
        %2149 = vmatpush1.msra.mxu0 0.0
        %2150 = vmatprep.subr.mxu0 0.0
        %2151 = vmatpush1.msra.mxu0 0.0
        %2152 = vmatprep.subr.mxu0 0.0
        %2153 = vmatpush1.msra.mxu0 0.0
        %2154 = vmatprep.subr.mxu0 0.0
        %2155 = vmatpush1.msra.mxu0 0.0
        %2156 = vmatprep.subr.mxu0 0.0
        %2157 = vmatpush1.msra.mxu0 0.0
        %2158 = vmatprep.subr.mxu0 0.0
        %2159 = vmatpush1.msra.mxu0 0.0
        %2160 = vmatprep.subr.mxu0 0.0
        %2161 = vmatpush1.msra.mxu0 0.0
        %2162 = vmatprep.subr.mxu0 0.0
        %2163 = vmatpush1.msra.mxu0 0.0
        %2164 = vmatprep.subr.mxu0 0.0
        %2165 = vmatpush1.msra.mxu0 0.0
        %2166 = vmatprep.subr.mxu0 0.0
        %2167 = vmatpush1.msra.mxu0 0.0
        %2168 = vmatprep.subr.mxu0 0.0
        %2169 = vmatpush1.msra.mxu0 0.0
        %2170 = vmatprep.subr.mxu0 0.0
        %2171 = vmatpush1.msra.mxu0 0.0
        %2172 = vmatprep.subr.mxu0 0.0
        %2173 = vmatpush1.msra.mxu0 0.0
        %2174 = vmatprep.subr.mxu0 0.0
        %2175 = vmatpush1.msra.mxu0 0.0
        %2176 = vmatprep.subr.mxu0 0.0
        %2177 = vmatpush1.msra.mxu0 0.0
        %2178 = vmatprep.subr.mxu0 0.0
        %2179 = vmatpush1.msra.mxu0 0.0
        %2180 = vmatprep.subr.mxu0 0.0
        %2181 = vmatpush1.msra.mxu0 0.0
        %2182 = vmatprep.subr.mxu0 0.0
        %2183 = vmatpush1.msra.mxu0 0.0
        %2184 = vmatprep.subr.mxu0 0.0
        %2185 = vmatpush1.msra.mxu0 0.0
        %2186 = vmatprep.subr.mxu0 0.0
        %2187 = vmatpush1.msra.mxu0 0.0
        %2188 = vmatprep.subr.mxu0 0.0
        %2189 = vmatpush1.msra.mxu0 0.0
        %2190 = vmatprep.subr.mxu0 0.0
        %2191 = vmatpush1.msra.mxu0 0.0
        %2192 = vmatprep.subr.mxu0 0.0
        %2193 = vmatpush1.msra.mxu0 0.0
        %2194 = vmatprep.subr.mxu0 0.0
        %2195 = vmatpush1.msra.mxu0 0.0
        %2196 = vmatprep.subr.mxu0 0.0
        %2197 = vmatpush1.msra.mxu0 0.0
        %2198 = vmatprep.subr.mxu0 0.0
        %2199 = vmatpush1.msra.mxu0 0.0
        %2200 = vmatprep.subr.mxu0 0.0
        %2201 = vmatpush1.msra.mxu0 0.0
        %2202 = vmatprep.subr.mxu0 0.0
        %2203 = vmatpush1.msra.mxu0 0.0
        %2204 = vmatprep.mubr.f32.mxu0 0.0
        %2205 = vmatmul.mubr.f32.gmra.mrb[0].mxu0 %v2138
        %v2206 = vpop.f32.mrb[0].mxu0
        %v2207 = vadd.f32 0.0, %v2206
        %v2208 = vpop.f32.mrb[0].mxu0
        %2209 = vdwg.mxu0
        %v2210 = vadd.f32 %v2134, %v2207
        %s2211 = scalar_lea.vmem %s3, 112
        %v2212 = vld [vmem:[%s2211] sm:$0xff]
        %v2214 = vsel %vm517, %v1038, 0
        %2216 = vmatprep.subr.mxu0 0.0
        %2217 = vmatpush1.msra.mxu0 %v2212
        %2218 = vmatprep.subr.mxu0 0.0
        %2219 = vmatpush1.msra.mxu0 0.0
        %2220 = vmatprep.subr.mxu0 0.0
        %2221 = vmatpush1.msra.mxu0 0.0
        %2222 = vmatprep.subr.mxu0 0.0
        %2223 = vmatpush1.msra.mxu0 0.0
        %2224 = vmatprep.subr.mxu0 0.0
        %2225 = vmatpush1.msra.mxu0 0.0
        %2226 = vmatprep.subr.mxu0 0.0
        %2227 = vmatpush1.msra.mxu0 0.0
        %2228 = vmatprep.subr.mxu0 0.0
        %2229 = vmatpush1.msra.mxu0 0.0
        %2230 = vmatprep.subr.mxu0 0.0
        %2231 = vmatpush1.msra.mxu0 0.0
        %2232 = vmatprep.subr.mxu0 0.0
        %2233 = vmatpush1.msra.mxu0 0.0
        %2234 = vmatprep.subr.mxu0 0.0
        %2235 = vmatpush1.msra.mxu0 0.0
        %2236 = vmatprep.subr.mxu0 0.0
        %2237 = vmatpush1.msra.mxu0 0.0
        %2238 = vmatprep.subr.mxu0 0.0
        %2239 = vmatpush1.msra.mxu0 0.0
        %2240 = vmatprep.subr.mxu0 0.0
        %2241 = vmatpush1.msra.mxu0 0.0
        %2242 = vmatprep.subr.mxu0 0.0
        %2243 = vmatpush1.msra.mxu0 0.0
        %2244 = vmatprep.subr.mxu0 0.0
        %2245 = vmatpush1.msra.mxu0 0.0
        %2246 = vmatprep.subr.mxu0 0.0
        %2247 = vmatpush1.msra.mxu0 0.0
        %2248 = vmatprep.subr.mxu0 0.0
        %2249 = vmatpush1.msra.mxu0 0.0
        %2250 = vmatprep.subr.mxu0 0.0
        %2251 = vmatpush1.msra.mxu0 0.0
        %2252 = vmatprep.subr.mxu0 0.0
        %2253 = vmatpush1.msra.mxu0 0.0
        %2254 = vmatprep.subr.mxu0 0.0
        %2255 = vmatpush1.msra.mxu0 0.0
        %2256 = vmatprep.subr.mxu0 0.0
        %2257 = vmatpush1.msra.mxu0 0.0
        %2258 = vmatprep.subr.mxu0 0.0
        %2259 = vmatpush1.msra.mxu0 0.0
        %2260 = vmatprep.subr.mxu0 0.0
        %2261 = vmatpush1.msra.mxu0 0.0
        %2262 = vmatprep.subr.mxu0 0.0
        %2263 = vmatpush1.msra.mxu0 0.0
        %2264 = vmatprep.subr.mxu0 0.0
        %2265 = vmatpush1.msra.mxu0 0.0
        %2266 = vmatprep.subr.mxu0 0.0
        %2267 = vmatpush1.msra.mxu0 0.0
        %2268 = vmatprep.subr.mxu0 0.0
        %2269 = vmatpush1.msra.mxu0 0.0
        %2270 = vmatprep.subr.mxu0 0.0
        %2271 = vmatpush1.msra.mxu0 0.0
        %2272 = vmatprep.subr.mxu0 0.0
        %2273 = vmatpush1.msra.mxu0 0.0
        %2274 = vmatprep.subr.mxu0 0.0
        %2275 = vmatpush1.msra.mxu0 0.0
        %2276 = vmatprep.subr.mxu0 0.0
        %2277 = vmatpush1.msra.mxu0 0.0
        %2278 = vmatprep.subr.mxu0 0.0
        %2279 = vmatpush1.msra.mxu0 0.0
        %2280 = vmatprep.mubr.f32.mxu0 0.0
        %2281 = vmatmul.mubr.f32.gmra.mrb[0].mxu0 %v2214
        %v2282 = vpop.f32.mrb[0].mxu0
        %v2283 = vadd.f32 0.0, %v2282
        %v2284 = vpop.f32.mrb[0].mxu0
        %2285 = vdwg.mxu0
        %v2286 = vadd.f32 %v2210, %v2283
        %s2287 = scalar_lea.vmem %s3, 120
        %v2288 = vld [vmem:[%s2287] sm:$0xff]
        %v2290 = vsel %vm517, %v1147, 0
        %2292 = vmatprep.subr.mxu0 0.0
        %2293 = vmatpush1.msra.mxu0 %v2288
        %2294 = vmatprep.subr.mxu0 0.0
        %2295 = vmatpush1.msra.mxu0 0.0
        %2296 = vmatprep.subr.mxu0 0.0
        %2297 = vmatpush1.msra.mxu0 0.0
        %2298 = vmatprep.subr.mxu0 0.0
        %2299 = vmatpush1.msra.mxu0 0.0
        %2300 = vmatprep.subr.mxu0 0.0
        %2301 = vmatpush1.msra.mxu0 0.0
        %2302 = vmatprep.subr.mxu0 0.0
        %2303 = vmatpush1.msra.mxu0 0.0
        %2304 = vmatprep.subr.mxu0 0.0
        %2305 = vmatpush1.msra.mxu0 0.0
        %2306 = vmatprep.subr.mxu0 0.0
        %2307 = vmatpush1.msra.mxu0 0.0
        %2308 = vmatprep.subr.mxu0 0.0
        %2309 = vmatpush1.msra.mxu0 0.0
        %2310 = vmatprep.subr.mxu0 0.0
        %2311 = vmatpush1.msra.mxu0 0.0
        %2312 = vmatprep.subr.mxu0 0.0
        %2313 = vmatpush1.msra.mxu0 0.0
        %2314 = vmatprep.subr.mxu0 0.0
        %2315 = vmatpush1.msra.mxu0 0.0
        %2316 = vmatprep.subr.mxu0 0.0
        %2317 = vmatpush1.msra.mxu0 0.0
        %2318 = vmatprep.subr.mxu0 0.0
        %2319 = vmatpush1.msra.mxu0 0.0
        %2320 = vmatprep.subr.mxu0 0.0
        %2321 = vmatpush1.msra.mxu0 0.0
        %2322 = vmatprep.subr.mxu0 0.0
        %2323 = vmatpush1.msra.mxu0 0.0
        %2324 = vmatprep.subr.mxu0 0.0
        %2325 = vmatpush1.msra.mxu0 0.0
        %2326 = vmatprep.subr.mxu0 0.0
        %2327 = vmatpush1.msra.mxu0 0.0
        %2328 = vmatprep.subr.mxu0 0.0
        %2329 = vmatpush1.msra.mxu0 0.0
        %2330 = vmatprep.subr.mxu0 0.0
        %2331 = vmatpush1.msra.mxu0 0.0
        %2332 = vmatprep.subr.mxu0 0.0
        %2333 = vmatpush1.msra.mxu0 0.0
        %2334 = vmatprep.subr.mxu0 0.0
        %2335 = vmatpush1.msra.mxu0 0.0
        %2336 = vmatprep.subr.mxu0 0.0
        %2337 = vmatpush1.msra.mxu0 0.0
        %2338 = vmatprep.subr.mxu0 0.0
        %2339 = vmatpush1.msra.mxu0 0.0
        %2340 = vmatprep.subr.mxu0 0.0
        %2341 = vmatpush1.msra.mxu0 0.0
        %2342 = vmatprep.subr.mxu0 0.0
        %2343 = vmatpush1.msra.mxu0 0.0
        %2344 = vmatprep.subr.mxu0 0.0
        %2345 = vmatpush1.msra.mxu0 0.0
        %2346 = vmatprep.subr.mxu0 0.0
        %2347 = vmatpush1.msra.mxu0 0.0
        %2348 = vmatprep.subr.mxu0 0.0
        %2349 = vmatpush1.msra.mxu0 0.0
        %2350 = vmatprep.subr.mxu0 0.0
        %2351 = vmatpush1.msra.mxu0 0.0
        %2352 = vmatprep.subr.mxu0 0.0
        %2353 = vmatpush1.msra.mxu0 0.0
        %2354 = vmatprep.subr.mxu0 0.0
        %2355 = vmatpush1.msra.mxu0 0.0
        %2356 = vmatprep.mubr.f32.mxu0 0.0
        %2357 = vmatmul.mubr.f32.gmra.mrb[0].mxu0 %v2290
        %v2358 = vpop.f32.mrb[0].mxu0
        %v2359 = vadd.f32 0.0, %v2358
        %v2360 = vpop.f32.mrb[0].mxu0
        %2361 = vdwg.mxu0
        %v2362 = vadd.f32 %v2286, %v2359
        %v2363 = vld [vmem:[%s4] sm:$0x1]
        %v2365 = vlaneseq
        %v2366 = vshrl.u32 %v2365, 7
        %v2367 = vsub.s32 0, %v2366
        %v2368 = vrot.slane %v2363, %v2367
        %v2370 = vadd.f32 %v2362, %v2368
        %2371 = vst.msk [vmem:[%s215] sm:$0xff] %vm237, %v2370
        %s2372 = sand.u32 %s137, 1
        %s2373 = scalar_lea.sflag [#allocation3], %s2372
        %s2374 = sand.u32 %s137, 1
        %s2375 = smul.addr %s2374, 8
        %s2376 = scalar_lea.vmem [#allocation2], %s2375
        // Predicated region
        $region41: #{attention_forward.1} parent=39 // pred_check
          %p2377 = pneg %p147
        $region42: #{attention_forward.1} parent=39 // pred_check_branch
          %2379 = sbr.rel (%p2377) target = $region44
        $region43: #{attention_forward.1} parent=39 // pred_region
          %s2381 = ssub.s32 128, 128
          %2382 = vsyncadd %s2373, %s2381
          %s2383 = smul.addr %s19, 128
          %s2384 = scalar_lea.hbm %s5, %s2383
          %s2386 = sshll.u32 %s2376, 4
          %s2387 = int_to_ptr.vmem [resolvable:$true] %s2386
          %2389 = dma.vmem_to_hbm [thread:$0]  %s2387, 128, %s2384, %s2373
        $region44: #{attention_forward.1} parent=39 // pred_fallthru
          _
      $region40: #{attention_forward.1} parent=5 // pred_fallthru
        _
      %p2390 = scmp.le.s32.totalorder 2, %s14
      // Predicated region
      $region45: #{attention_forward.1} parent=5 // pred_check
        %p2391 = pneg %p2390
      $region46: #{attention_forward.1} parent=5 // pred_check_branch
        %2393 = sbr.rel (%p2391) target = $region48
      $region47: #{attention_forward.1} parent=5 // pred_region
        %s2394 = ssub.s32 %s14, 2
        // Predicated region
        $region49: #{attention_forward.1} parent=47 // pred_check
          %p2395 = pneg %p153
        $region50: #{attention_forward.1} parent=47 // pred_check_branch
          %2397 = sbr.rel (%p2395) target = $region52
        $region51: #{attention_forward.1} parent=47 // pred_region
          %s2398 = sand.u32 %s138, 1
          %s2399 = scalar_lea.sflag [#allocation3], %s2398
          %s2400 = sand.u32 %s138, 1
          %s2401 = smul.addr %s2400, 8
          %s2402 = scalar_lea.vmem [#allocation2], %s2401
          %2403 = dma.done %s2399, 128
        $region52: #{attention_forward.1} parent=47 // pred_fallthru
          _
      $region48: #{attention_forward.1} parent=5 // pred_fallthru
        _
    $region6: #{attention_forward.1} parent=1 // loop_footer
      %s18 = sadd.s32 1, %s14
    $region7: #{attention_forward.1} parent=1 // loop_footer_branch
      %13 = sbr.rel target = $region3
    $region8: #{attention_forward.1} parent=1 // loop_exit
      _
    %2404 = vsyncpa [#allocation3], 1
    %s2405 = scalar_lea.sflag [#allocation3], 1
    %2406 = vsyncpa %s2405, 1

</llo_original>
